<compile_context>
chip_gen: v6e
topology: v6e:2x2x1
jax: 0.10.0
libtpu: 0.0.40
codegen_flags: <defaults>
</compile_context>

<pallas_src>
import jax
import jax.numpy as jnp
from jax import lax
from jax.experimental import pallas as pl
from jax.experimental.pallas import tpu as pltpu


def _round_up(x, m):
    return (x + m - 1) // m * m


# ------------------------------ Pallas kernel ----------------------------------
def _moe_expert_kernel(x_ref, w_ref, wg_ref, wu_ref, wd_ref, o_ref, acc_ref):
    """One (token-tile, expert) step.

    grid = (num_token_tiles, E + 1); the expert axis is innermost ("arbitrary").
    Streams one expert's (gate, up, down) weights per step and accumulates the
    routing-weighted FFN output into a f32 VMEM scratch; the tile output is
    written on the last expert step.
    """
    e = pl.program_id(1)

    @pl.when(e == 0)
    def _():
        acc_ref[...] = jnp.zeros_like(acc_ref)

    x = x_ref[...]                                                      # (tm, Hp) bf16
    hg = jnp.dot(x, wg_ref[...], preferred_element_type=jnp.float32)    # (tm, Ip) f32
    hu = jnp.dot(x, wu_ref[...], preferred_element_type=jnp.float32)    # (tm, Ip) f32
    h = (hg * jax.nn.sigmoid(hg) * hu).astype(x.dtype)                  # silu(g)*u
    oe = jnp.dot(h, wd_ref[...], preferred_element_type=jnp.float32)    # (tm, Hp) f32

    # per-token routing weight for this expert = column e of the dense weights
    w = w_ref[...]                                                      # (tm, E+1) f32
    col_mask = lax.broadcasted_iota(jnp.int32, w.shape, 1) == e
    col = jnp.sum(jnp.where(col_mask, w, 0.0), axis=-1, keepdims=True)  # (tm, 1)

    acc_ref[...] += col * oe

    @pl.when(e == pl.num_programs(1) - 1)
    def _():
        o_ref[...] = acc_ref[...].astype(o_ref.dtype)


# ------------------------------ wrapper ----------------------------------------
def moe_feedforward(x, params, *, top_k=2, norm_topk_prob=True, tm=128,
                    compute_dtype=jnp.bfloat16):
    B, S, H = x.shape
    T = B * S
    x2 = x.reshape(T, H)

    router = params["router"]                  # (E, H)
    wg_t = params["wg_t"]                      # (E, H, I)
    wu_t = params["wu_t"]                      # (E, H, I)
    wd_t = params["wd_t"]                      # (E, I, H)
    sg_t, su_t, sd_t = params["sg_t"], params["su_t"], params["sd_t"]
    E, _, I = wg_t.shape

    # ---------------- gating in plain XLA (f32, exact routing) ----------------
    logits = x2.astype(jnp.float32) @ router.T.astype(jnp.float32)      # (T, E)
    scores = jax.nn.softmax(logits, axis=-1)
    tw, ti = lax.top_k(scores, top_k)
    if top_k > 1 and norm_topk_prob:
        tw = tw / (jnp.sum(tw, axis=-1, keepdims=True) + 1e-20)
    dense_w = jnp.zeros((T, E), jnp.float32).at[jnp.arange(T)[:, None], ti].add(tw)
    # shared expert always applied with weight 1 -> folded in as expert index E
    w_ext = jnp.concatenate([dense_w, jnp.ones((T, 1), jnp.float32)], axis=1)

    wg_all = jnp.concatenate([wg_t, sg_t[None]], axis=0)                # (E+1, H, I)
    wu_all = jnp.concatenate([wu_t, su_t[None]], axis=0)                # (E+1, H, I)
    wd_all = jnp.concatenate([wd_t, sd_t[None]], axis=0)                # (E+1, I, H)

    # -------------------- lane / token padding + dtype cast --------------------
    Hp = _round_up(H, 128)
    Ip = _round_up(I, 128)
    Tp = _round_up(T, tm)
    ES = E + 1
    n_tiles = Tp // tm

    x2p = jnp.pad(x2, ((0, Tp - T), (0, Hp - H))).astype(compute_dtype)
    w_extp = jnp.pad(w_ext, ((0, Tp - T), (0, 0)))
    wg_all = jnp.pad(wg_all, ((0, 0), (0, Hp - H), (0, Ip - I))).astype(compute_dtype)
    wu_all = jnp.pad(wu_all, ((0, 0), (0, Hp - H), (0, Ip - I))).astype(compute_dtype)
    wd_all = jnp.pad(wd_all, ((0, 0), (0, Ip - I), (0, Hp - H))).astype(compute_dtype)

    itemsize_c = jnp.dtype(compute_dtype).itemsize
    itemsize_o = jnp.dtype(x.dtype).itemsize
    cost = pl.CostEstimate(
        flops=2 * Tp * ES * 3 * Hp * Ip,
        transcendentals=Tp * ES * Ip,
        bytes_accessed=int(Tp * Hp * itemsize_c + Tp * ES * 4
                           + n_tiles * 3 * ES * Hp * Ip * itemsize_c
                           + Tp * Hp * itemsize_o),
    )

    y2p = pl.pallas_call(
        _moe_expert_kernel,
        out_shape=jax.ShapeDtypeStruct((Tp, Hp), x.dtype),
        grid_spec=pltpu.PrefetchScalarGridSpec(
            num_scalar_prefetch=0,
            grid=(n_tiles, ES),
            in_specs=[
                pl.BlockSpec((tm, Hp), lambda i, e: (i, 0)),            # tokens
                pl.BlockSpec((tm, ES), lambda i, e: (i, 0)),            # routing w
                pl.BlockSpec((None, Hp, Ip), lambda i, e: (e, 0, 0)),   # gate_proj[e]
                pl.BlockSpec((None, Hp, Ip), lambda i, e: (e, 0, 0)),   # up_proj[e]
                pl.BlockSpec((None, Ip, Hp), lambda i, e: (e, 0, 0)),   # down_proj[e]
            ],
            out_specs=pl.BlockSpec((tm, Hp), lambda i, e: (i, 0)),
            scratch_shapes=[pltpu.VMEM((tm, Hp), jnp.float32)],
        ),
        compiler_params=pltpu.CompilerParams(
            dimension_semantics=("parallel", "arbitrary")),
        cost_estimate=cost,
    )(x2p, w_extp, wg_all, wu_all, wd_all)

    return y2p[:T, :H].reshape(B, S, H)


# --------------------------- pure-JAX reference --------------------------------
def ref_moe_feedforward(x, params, *, top_k=2, norm_topk_prob=True):
    B, S, H = x.shape
    T = B * S
    x2 = x.reshape(T, H).astype(jnp.float32)

    logits = x2 @ params["router"].T
    scores = jax.nn.softmax(logits, axis=-1)
    tw, ti = lax.top_k(scores, top_k)
    if top_k > 1 and norm_topk_prob:
        tw = tw / (jnp.sum(tw, axis=-1, keepdims=True) + 1e-20)
    E = params["router"].shape[0]
    dense_w = jnp.zeros((T, E), jnp.float32)
    dense_w = dense_w.at[jnp.arange(T)[:, None], ti].add(tw)

    def ffn(xx, gt, ut, dt):
        return (jax.nn.silu(xx @ gt) * (xx @ ut)) @ dt

    y = jnp.zeros_like(x2)
    for e in range(E):
        y = y + dense_w[:, e:e + 1] * ffn(x2, params["wg_t"][e],
                                          params["wu_t"][e], params["wd_t"][e])
    y = y + ffn(x2, params["sg_t"], params["su_t"], params["sd_t"])
    return y.reshape(B, S, H)


# ------------------------------ parameter init ---------------------------------
def init_params(key, hidden_size, intermediate_size, n_routed_experts):
    ks = jax.random.split(key, 8)
    H, I, E = hidden_size, intermediate_size, n_routed_experts

    def lin(k, out_f, in_f):
        bound = 1.0 / jnp.sqrt(in_f)
        return jax.random.uniform(k, (out_f, in_f), jnp.float32, -bound, bound)

    router = jax.random.uniform(ks[0], (E, H), jnp.float32, -0.3, 0.3)
    gate_w = jax.random.uniform(ks[1], (E, I, H), jnp.float32,
                                -1.0 / jnp.sqrt(H), 1.0 / jnp.sqrt(H))
    up_w = jax.random.uniform(ks[2], (E, I, H), jnp.float32,
                              -1.0 / jnp.sqrt(H), 1.0 / jnp.sqrt(H))
    down_w = jax.random.uniform(ks[3], (E, H, I), jnp.float32,
                                -1.0 / jnp.sqrt(I), 1.0 / jnp.sqrt(I))
    sg = lin(ks[4], I, H)
    su = lin(ks[5], I, H)
    sd = lin(ks[6], H, I)

    return dict(
        router=router,
        wg_t=jnp.transpose(gate_w, (0, 2, 1)),   # (E, H, I)
        wu_t=jnp.transpose(up_w, (0, 2, 1)),     # (E, H, I)
        wd_t=jnp.transpose(down_w, (0, 2, 1)),   # (E, I, H)
        sg_t=sg.T, su_t=su.T, sd_t=sd.T,
    )


if __name__ == "__main__":
    # MiniMindConfig-style small config
    B, S, H = 2, 8, 64
    E, TOP_K, N_SHARED = 4, 2, 1
    inter = int(H * 8 / 3)
    I = 64 * ((inter + 64 - 1) // 64)          # -> 192

    key = jax.random.PRNGKey(0)
    kx, kp = jax.random.split(key)
    x = jax.random.normal(kx, (B, S, H), jnp.float32)
    params = init_params(kp, H, I, E)

    y_ref = ref_moe_feedforward(x, params, top_k=TOP_K, norm_topk_prob=True)

    # f32 compute path: tight correctness check against the f32 reference.
    y_f32 = moe_feedforward(x, params, top_k=TOP_K, norm_topk_prob=True,
                            compute_dtype=jnp.float32)
    y_f32 = jax.block_until_ready(y_f32)
    assert y_f32.shape == (B, S, H)
    assert jnp.allclose(y_f32, y_ref, atol=1e-4, rtol=1e-4), "f32 mismatch vs reference"

    # bf16 compute path (default / performance path), looser tolerance.
    y_bf16 = moe_feedforward(x, params, top_k=TOP_K, norm_topk_prob=True)
    y_bf16 = jax.block_until_ready(y_bf16)
    assert y_bf16.shape == (B, S, H)
    assert jnp.allclose(y_bf16, y_ref, atol=3e-2, rtol=3e-2), "bf16 mismatch vs reference"

    print("KERNEL_OK")
</pallas_src>

<mosaic_0001>
module attributes {stable_mosaic.version = 11 : i64} {
  func.func @_moe_expert_kernel(%arg0: i32, %arg1: i32, %arg2: memref<128x128xf32, #tpu.memory_space<vmem>>, %arg3: memref<128x5xf32, #tpu.memory_space<vmem>>, %arg4: memref<1x128x256xf32, #tpu.memory_space<vmem>>, %arg5: memref<1x128x256xf32, #tpu.memory_space<vmem>>, %arg6: memref<1x256x128xf32, #tpu.memory_space<vmem>>, %arg7: memref<128x128xf32, #tpu.memory_space<vmem>>, %arg8: memref<128x128xf32, #tpu.memory_space<vmem>>) attributes {dimension_semantics = [#tpu.dimension_semantics<parallel>, #tpu.dimension_semantics<arbitrary>], iteration_bounds = array<i64: 1, 5>, scalar_prefetch = 0 : i64, scratch_operands = 1 : i64, tpu.core_type = #tpu.core_type<tc>, window_params = [{transform_indices = @transform_0, window_bounds = array<i64: 128, 128>}, {transform_indices = @transform_1, window_bounds = array<i64: 128, 5>}, {transform_indices = @transform_2, window_bounds = array<i64: 1, 128, 256>}, {transform_indices = @transform_3, window_bounds = array<i64: 1, 128, 256>}, {transform_indices = @transform_4, window_bounds = array<i64: 1, 256, 128>}, {transform_indices = @transform_5, window_bounds = array<i64: 128, 128>}]} {
    %c0_i32 = arith.constant 0 : i32
    %0 = arith.cmpi eq, %arg1, %c0_i32 : i32
    %1 = arith.extui %0 : i1 to i32
    %c0_i32_0 = arith.constant 0 : i32
    %2 = arith.cmpi ne, %1, %c0_i32_0 : i32
    scf.if %2 {
      %cst_23 = arith.constant 0.000000e+00 : f32
      %36 = vector.broadcast %cst_23 : f32 to vector<128x128xf32>
      %c0_24 = arith.constant 0 : index
      %c0_25 = arith.constant 0 : index
      %37 = vector.load %arg8[%c0_24, %c0_25] : memref<128x128xf32, #tpu.memory_space<vmem>>, vector<128x128xf32>
      tpu.vector_store %arg8[%c0_24, %c0_25], %36 {strides = array<i32>} : memref<128x128xf32, #tpu.memory_space<vmem>>, vector<128x128xf32>,
    } else {
    }
    %c0 = arith.constant 0 : index
    %c0_1 = arith.constant 0 : index
    %3 = vector.load %arg2[%c0, %c0_1] : memref<128x128xf32, #tpu.memory_space<vmem>>, vector<128x128xf32>
    %c0_2 = arith.constant 0 : index
    %c0_3 = arith.constant 0 : index
    %c0_4 = arith.constant 0 : index
    %4 = vector.load %arg4[%c0_2, %c0_3, %c0_4] : memref<1x128x256xf32, #tpu.memory_space<vmem>>, vector<1x128x256xf32>
    %5 = vector.shape_cast %4 : vector<1x128x256xf32> to vector<128x256xf32>
    %cst = arith.constant dense<0.000000e+00> : vector<128x256xf32>
    %6 = tpu.matmul %3, %5, %cst {dimension_numbers = #tpu.dot_dimension_numbers<[1], [0], [0], [1], [0, 0, 1, 1], [], []>} : vector<128x128xf32>, vector<128x256xf32>, vector<128x256xf32> -> vector<128x256xf32>
    %c0_5 = arith.constant 0 : index
    %c0_6 = arith.constant 0 : index
    %c0_7 = arith.constant 0 : index
    %7 = vector.load %arg5[%c0_5, %c0_6, %c0_7] : memref<1x128x256xf32, #tpu.memory_space<vmem>>, vector<1x128x256xf32>
    %8 = vector.shape_cast %7 : vector<1x128x256xf32> to vector<128x256xf32>
    %cst_8 = arith.constant dense<0.000000e+00> : vector<128x256xf32>
    %9 = tpu.matmul %3, %8, %cst_8 {dimension_numbers = #tpu.dot_dimension_numbers<[1], [0], [0], [1], [0, 0, 1, 1], [], []>} : vector<128x128xf32>, vector<128x256xf32>, vector<128x256xf32> -> vector<128x256xf32>
    %10 = arith.negf %6 : vector<128x256xf32>
    %11 = math.exp %10 : vector<128x256xf32>
    %cst_9 = arith.constant 1.000000e+00 : f32
    %12 = vector.broadcast %cst_9 : f32 to vector<128x256xf32>
    %13 = arith.addf %12, %11 : vector<128x256xf32>
    %14 = arith.divf %12, %13 : vector<128x256xf32>
    %15 = arith.mulf %6, %14 : vector<128x256xf32>
    %16 = arith.mulf %15, %9 : vector<128x256xf32>
    %c0_10 = arith.constant 0 : index
    %c0_11 = arith.constant 0 : index
    %c0_12 = arith.constant 0 : index
    %17 = vector.load %arg6[%c0_10, %c0_11, %c0_12] : memref<1x256x128xf32, #tpu.memory_space<vmem>>, vector<1x256x128xf32>
    %18 = vector.shape_cast %17 : vector<1x256x128xf32> to vector<256x128xf32>
    %cst_13 = arith.constant dense<0.000000e+00> : vector<128x128xf32>
    %19 = tpu.matmul %16, %18, %cst_13 {dimension_numbers = #tpu.dot_dimension_numbers<[1], [0], [0], [1], [0, 0, 1, 1], [], []>} : vector<128x256xf32>, vector<256x128xf32>, vector<128x128xf32> -> vector<128x128xf32>
    %c0_14 = arith.constant 0 : index
    %c0_15 = arith.constant 0 : index
    %20 = vector.load %arg3[%c0_14, %c0_15] : memref<128x5xf32, #tpu.memory_space<vmem>>, vector<128x5xf32>
    %21 = tpu.iota {dimensions = array<i32: 1>} : vector<128x5xi32>
    %22 = vector.broadcast %arg1 : i32 to vector<128x5xi32>
    %23 = arith.cmpi eq, %21, %22 : vector<128x5xi32>
    %cst_16 = arith.constant 0.000000e+00 : f32
    %24 = vector.broadcast %cst_16 : f32 to vector<128x5xf32>
    %25 = arith.select %23, %20, %24 : vector<128x5xi1>, vector<128x5xf32>
    %cst_17 = arith.constant dense<0.000000e+00> : vector<128xf32>
    %26 = vector.multi_reduction <add>, %25, %cst_17 [1] : vector<128x5xf32> to vector<128xf32>
    %27 = vector.shape_cast %26 : vector<128xf32> to vector<128x1xf32>
    %c0_18 = arith.constant 0 : index
    %c0_19 = arith.constant 0 : index
    %28 = vector.load %arg8[%c0_18, %c0_19] : memref<128x128xf32, #tpu.memory_space<vmem>>, vector<128x128xf32>
    %29 = vector.broadcast %27 : vector<128x1xf32> to vector<128x128xf32>
    %30 = arith.mulf %29, %19 : vector<128x128xf32>
    %31 = arith.addf %28, %30 : vector<128x128xf32>
    %c0_20 = arith.constant 0 : index
    %c0_21 = arith.constant 0 : index
    %32 = vector.load %arg8[%c0_20, %c0_21] : memref<128x128xf32, #tpu.memory_space<vmem>>, vector<128x128xf32>
    tpu.vector_store %arg8[%c0_20, %c0_21], %31 {strides = array<i32>} : memref<128x128xf32, #tpu.memory_space<vmem>>, vector<128x128xf32>,
    %c4_i32 = arith.constant 4 : i32
    %33 = arith.cmpi eq, %arg1, %c4_i32 : i32
    %34 = arith.extui %33 : i1 to i32
    %c0_i32_22 = arith.constant 0 : i32
    %35 = arith.cmpi ne, %34, %c0_i32_22 : i32
    scf.if %35 {
      %c0_23 = arith.constant 0 : index
      %c0_24 = arith.constant 0 : index
      %36 = vector.load %arg8[%c0_23, %c0_24] : memref<128x128xf32, #tpu.memory_space<vmem>>, vector<128x128xf32>
      %c0_25 = arith.constant 0 : index
      %c0_26 = arith.constant 0 : index
      %37 = vector.load %arg7[%c0_25, %c0_26] : memref<128x128xf32, #tpu.memory_space<vmem>>, vector<128x128xf32>
      tpu.vector_store %arg7[%c0_25, %c0_26], %36 {strides = array<i32>} : memref<128x128xf32, #tpu.memory_space<vmem>>, vector<128x128xf32>,
    } else {
    }
    return
  }
  func.func @transform_0(%arg0: i32, %arg1: i32) -> (i32, i32) {
    %c0_i32 = arith.constant 0 : i32
    %c0_i32_0 = arith.constant 0 : i32
    return %arg0, %c0_i32 : i32, i32
  }
  func.func @transform_1(%arg0: i32, %arg1: i32) -> (i32, i32) {
    %c0_i32 = arith.constant 0 : i32
    %c0_i32_0 = arith.constant 0 : i32
    return %arg0, %c0_i32 : i32, i32
  }
  func.func @transform_2(%arg0: i32, %arg1: i32) -> (i32, i32, i32) {
    %c0_i32 = arith.constant 0 : i32
    %c0_i32_0 = arith.constant 0 : i32
    %c0_i32_1 = arith.constant 0 : i32
    return %arg1, %c0_i32, %c0_i32_0 : i32, i32, i32
  }
  func.func @transform_3(%arg0: i32, %arg1: i32) -> (i32, i32, i32) {
    %c0_i32 = arith.constant 0 : i32
    %c0_i32_0 = arith.constant 0 : i32
    %c0_i32_1 = arith.constant 0 : i32
    return %arg1, %c0_i32, %c0_i32_0 : i32, i32, i32
  }
  func.func @transform_4(%arg0: i32, %arg1: i32) -> (i32, i32, i32) {
    %c0_i32 = arith.constant 0 : i32
    %c0_i32_0 = arith.constant 0 : i32
    %c0_i32_1 = arith.constant 0 : i32
    return %arg1, %c0_i32, %c0_i32_0 : i32, i32, i32
  }
  func.func @transform_5(%arg0: i32, %arg1: i32) -> (i32, i32) {
    %c0_i32 = arith.constant 0 : i32
    %c0_i32_0 = arith.constant 0 : i32
    return %arg0, %c0_i32 : i32, i32
  }
}

</mosaic_0001>

<llo_original>
// kernel: tpu_custom_call.1
$region0: #{tpu_custom_call.1}
  #allocation0 [shape = 'u32[]', space=smem, size = 0x4, offset = 0x4, fixed_abs, tag = 'smem constant byte address 0x4 - core index']
  #allocation1 [shape = 'u32[144,128]{1,0:T(1,128)}', space=vmem, size = 0x12000, scoped, tag = 'internal scratch']
  #allocation2 [shape = 'f32[128,128]{1,0:T(8,128)}', space=vmem, size = 0x10000, scoped, tag = 'scratch operand']
  %s0 = inlined_call_operand.vmem [shape: f32[128,128], index: 0, kind: input, shape index: {}]
  %s1 = inlined_call_operand.vmem [shape: f32[128,5], index: 1, kind: input, shape index: {}]
  %s2 = inlined_call_operand.hbm [shape: f32[5,128,256], index: 2, kind: input, shape index: {}]
  %s3 = inlined_call_operand.hbm [shape: f32[5,128,256], index: 3, kind: input, shape index: {}]
  %s4 = inlined_call_operand.hbm [shape: f32[5,256,128], index: 4, kind: input, shape index: {}]
  %s5 = inlined_call_operand.hbm [shape: f32[128,128], index: 5, kind: output, shape index: {}]
  %s6 = sld [smem:[#allocation0]]
  $region73: #{tpu_custom_call.1} parent=0
    _
  %s8 = ssub.s32 1, %s6
  %s9 = scalar_select 0, %s8, %s6
  $region1: #{tpu_custom_call.1} parent=0
    #allocation3 [shape = 'u8[262144]{0}', space=vmem, size = 0x40000, scoped, tag = 'input window, operand 2']
    #allocation4 [shape = 's32[2]{0}', space=sflag, size = 0x8, scoped, tag = 'scoped memory for tpu_custom_call.1']
    #allocation5 [shape = 's32[2]{0}', space=sflag, size = 0x8, scoped, tag = 'scoped memory for tpu_custom_call.1']
    #allocation6 [shape = 'u8[262144]{0}', space=vmem, size = 0x40000, scoped, tag = 'input window, operand 3']
    #allocation7 [shape = 's32[2]{0}', space=sflag, size = 0x8, scoped, tag = 'scoped memory for tpu_custom_call.1']
    #allocation8 [shape = 'u8[262144]{0}', space=vmem, size = 0x40000, scoped, tag = 'input window, operand 4']
    #allocation9 [shape = 'u8[65536]{0}', space=vmem, size = 0x10000, scoped, tag = 'output window, operand 0, single buffered']
    %10 = vsyncpa [#allocation4], 0
    %s11 = scalar_lea.sflag [#allocation4], 1
    %12 = vsyncpa %s11, 0
    %13 = vsyncpa [#allocation7], 0
    %s14 = scalar_lea.sflag [#allocation7], 1
    %15 = vsyncpa %s14, 0
    %16 = vsyncpa [#allocation5], 0
    loop: start=0, step=1, limit=7
    $region2: #{tpu_custom_call.1} parent=1 // loop_pre_header
      _
    $region3: #{tpu_custom_call.1} parent=1 // loop_header
      %s18 = sphi 0, %s22
      %p19 = scmp.ge.s32.totalorder %s18, 7
      %s25 = sphi 0, %s37
      %s26 = sphi 0, %s33
      %s27 = sphi 0, %s25
      %s28 = sphi 0, %s26
      %s29 = sphi 0, %s27
      %s30 = sphi 0, %s28
      %s40 = sphi 0, %s42
      %s43 = sphi 0, %s40
      %s44 = sphi 0, %s43
      %s60 = sphi 0, %s44
      %s66 = sphi 0, %s68
      %s69 = sphi 0, %s66
      %s70 = sphi 0, %s69
      %s86 = sphi 0, %s70
      %s92 = sphi 0, %s94
      %s95 = sphi 0, %s92
      %s96 = sphi 0, %s95
      %s112 = sphi 0, %s96
      %s118 = sphi 0, %s120
      %s121 = sphi 0, %s118
      %s122 = sphi 0, %s121
      %s138 = sphi 0, %s122
      %s144 = sphi 0, %s146
      %s147 = sphi 0, %s144
      %s148 = sphi 0, %s147
      %s164 = sphi 0, %s148
      %s170 = sphi 0, %s172
      %s173 = sphi 0, %s170
      %s174 = sphi 0, %s173
      %s190 = sphi 0, %s174
    $region4: #{tpu_custom_call.1} parent=1 // loop_header_branch
      %21 = sbr.rel (%p19) target = $region8
    $region5: #{tpu_custom_call.1} parent=1 // loop_body
      %s23 = ssub.s32 %s18, 1
      %s24 = ssub.s32 %s18, 2
      %s31 = sadd.s32 1, %s26
      %p32 = scmp.ge.s32.totalorder %s31, 5
      %s33 = scalar_select %p32, 0, %s31
      %s34 = sadd.s32 1, %s25
      %s35 = scalar_select %p32, %s34, %s25
      %p36 = scmp.ge.s32.totalorder %s35, 1
      %s37 = scalar_select %p36, 0, %s35
      %s38 = ssub.s32 %s25, %s37
      %p39 = scmp.eq.s32.totalorder %s38, 0
      %s41 = sadd.s32 %s40, 1
      %s42 = scalar_select %p39, %s40, %s41
      %p45 = pneg %p39
      %p46 = scmp.eq.s32.totalorder %s18, 4
      %p47 = por %p45, %p46
      %p48 = scmp.ne.s32.totalorder %s40, %s43
      %p49 = scmp.eq.s32.totalorder %s18, 0
      %p50 = por %p48, %p49
      %p51 = scmp.ne.s32.totalorder %s40, %s43
      %p52 = scmp.eq.s32.totalorder %s23, 4
      %p53 = por %p51, %p52
      %p54 = scmp.ne.s32.totalorder %s43, %s44
      %p55 = scmp.eq.s32.totalorder %s23, 0
      %p56 = por %p54, %p55
      %p57 = scmp.ne.s32.totalorder %s43, %s44
      %p58 = scmp.eq.s32.totalorder %s24, 4
      %p59 = por %p57, %p58
      %p61 = scmp.ne.s32.totalorder %s44, %s60
      %p62 = scmp.eq.s32.totalorder %s24, 0
      %p63 = por %p61, %p62
      %s64 = ssub.s32 %s25, %s37
      %p65 = scmp.eq.s32.totalorder %s64, 0
      %s67 = sadd.s32 %s66, 1
      %s68 = scalar_select %p65, %s66, %s67
      %p71 = pneg %p65
      %p72 = scmp.eq.s32.totalorder %s18, 4
      %p73 = por %p71, %p72
      %p74 = scmp.ne.s32.totalorder %s66, %s69
      %p75 = scmp.eq.s32.totalorder %s18, 0
      %p76 = por %p74, %p75
      %p77 = scmp.ne.s32.totalorder %s66, %s69
      %p78 = scmp.eq.s32.totalorder %s23, 4
      %p79 = por %p77, %p78
      %p80 = scmp.ne.s32.totalorder %s69, %s70
      %p81 = scmp.eq.s32.totalorder %s23, 0
      %p82 = por %p80, %p81
      %p83 = scmp.ne.s32.totalorder %s69, %s70
      %p84 = scmp.eq.s32.totalorder %s24, 4
      %p85 = por %p83, %p84
      %p87 = scmp.ne.s32.totalorder %s70, %s86
      %p88 = scmp.eq.s32.totalorder %s24, 0
      %p89 = por %p87, %p88
      %s90 = ssub.s32 %s26, %s33
      %p91 = scmp.eq.s32.totalorder %s90, 0
      %s93 = sadd.s32 %s92, 1
      %s94 = scalar_select %p91, %s92, %s93
      %p97 = pneg %p91
      %p98 = scmp.eq.s32.totalorder %s18, 4
      %p99 = por %p97, %p98
      %p100 = scmp.ne.s32.totalorder %s92, %s95
      %p101 = scmp.eq.s32.totalorder %s18, 0
      %p102 = por %p100, %p101
      %p103 = scmp.ne.s32.totalorder %s92, %s95
      %p104 = scmp.eq.s32.totalorder %s23, 4
      %p105 = por %p103, %p104
      %p106 = scmp.ne.s32.totalorder %s95, %s96
      %p107 = scmp.eq.s32.totalorder %s23, 0
      %p108 = por %p106, %p107
      %p109 = scmp.ne.s32.totalorder %s95, %s96
      %p110 = scmp.eq.s32.totalorder %s24, 4
      %p111 = por %p109, %p110
      %p113 = scmp.ne.s32.totalorder %s96, %s112
      %p114 = scmp.eq.s32.totalorder %s24, 0
      %p115 = por %p113, %p114
      %s116 = ssub.s32 %s26, %s33
      %p117 = scmp.eq.s32.totalorder %s116, 0
      %s119 = sadd.s32 %s118, 1
      %s120 = scalar_select %p117, %s118, %s119
      %p123 = pneg %p117
      %p124 = scmp.eq.s32.totalorder %s18, 4
      %p125 = por %p123, %p124
      %p126 = scmp.ne.s32.totalorder %s118, %s121
      %p127 = scmp.eq.s32.totalorder %s18, 0
      %p128 = por %p126, %p127
      %p129 = scmp.ne.s32.totalorder %s118, %s121
      %p130 = scmp.eq.s32.totalorder %s23, 4
      %p131 = por %p129, %p130
      %p132 = scmp.ne.s32.totalorder %s121, %s122
      %p133 = scmp.eq.s32.totalorder %s23, 0
      %p134 = por %p132, %p133
      %p135 = scmp.ne.s32.totalorder %s121, %s122
      %p136 = scmp.eq.s32.totalorder %s24, 4
      %p137 = por %p135, %p136
      %p139 = scmp.ne.s32.totalorder %s122, %s138
      %p140 = scmp.eq.s32.totalorder %s24, 0
      %p141 = por %p139, %p140
      %s142 = ssub.s32 %s26, %s33
      %p143 = scmp.eq.s32.totalorder %s142, 0
      %s145 = sadd.s32 %s144, 1
      %s146 = scalar_select %p143, %s144, %s145
      %p149 = pneg %p143
      %p150 = scmp.eq.s32.totalorder %s18, 4
      %p151 = por %p149, %p150
      %p152 = scmp.ne.s32.totalorder %s144, %s147
      %p153 = scmp.eq.s32.totalorder %s18, 0
      %p154 = por %p152, %p153
      %p155 = scmp.ne.s32.totalorder %s144, %s147
      %p156 = scmp.eq.s32.totalorder %s23, 4
      %p157 = por %p155, %p156
      %p158 = scmp.ne.s32.totalorder %s147, %s148
      %p159 = scmp.eq.s32.totalorder %s23, 0
      %p160 = por %p158, %p159
      %p161 = scmp.ne.s32.totalorder %s147, %s148
      %p162 = scmp.eq.s32.totalorder %s24, 4
      %p163 = por %p161, %p162
      %p165 = scmp.ne.s32.totalorder %s148, %s164
      %p166 = scmp.eq.s32.totalorder %s24, 0
      %p167 = por %p165, %p166
      %s168 = ssub.s32 %s25, %s37
      %p169 = scmp.eq.s32.totalorder %s168, 0
      %s171 = sadd.s32 %s170, 1
      %s172 = scalar_select %p169, %s170, %s171
      %p175 = pneg %p169
      %p176 = scmp.eq.s32.totalorder %s18, 4
      %p177 = por %p175, %p176
      %p178 = scmp.ne.s32.totalorder %s170, %s173
      %p179 = scmp.eq.s32.totalorder %s18, 0
      %p180 = por %p178, %p179
      %p181 = scmp.ne.s32.totalorder %s170, %s173
      %p182 = scmp.eq.s32.totalorder %s23, 4
      %p183 = por %p181, %p182
      %p184 = scmp.ne.s32.totalorder %s173, %s174
      %p185 = scmp.eq.s32.totalorder %s23, 0
      %p186 = por %p184, %p185
      %p187 = scmp.ne.s32.totalorder %s173, %s174
      %p188 = scmp.eq.s32.totalorder %s24, 4
      %p189 = por %p187, %p188
      %p191 = scmp.ne.s32.totalorder %s174, %s190
      %p192 = scmp.eq.s32.totalorder %s24, 0
      %p193 = por %p191, %p192
      %p194 = scmp.le.s32.totalorder 1, %s18
      %p195 = scmp.lt.s32.totalorder %s18, 6
      %p196 = pnand %p194, %p195
      %p197 = pneg %p196
      // Predicated region
      $region9: #{tpu_custom_call.1} parent=5 // pred_check
        _
      $region10: #{tpu_custom_call.1} parent=5 // pred_check_branch
        %199 = sbr.rel (%p196) target = $region12
      $region11: #{tpu_custom_call.1} parent=5 // pred_region
        %s200 = ssub.s32 %s18, 1
        // Predicated region
        $region13: #{tpu_custom_call.1} parent=11 // pred_check
          %p201 = pneg %p56
        $region14: #{tpu_custom_call.1} parent=11 // pred_check_branch
          %203 = sbr.rel (%p201) target = $region16
        $region15: #{tpu_custom_call.1} parent=11 // pred_region
          %s204 = smul.u32 16, %s27
          %p205 = scmp.lt.s32.totalorder %s204, 15
          %s206 = scalar_select %p205, %s204, 15
          %s207 = smul.addr %s206, 8
          %s208 = scalar_lea.vmem %s0, %s207
          %s209 = smul.u32 16, %s27
        $region16: #{tpu_custom_call.1} parent=11 // pred_fallthru
          _
        // Predicated region
        $region17: #{tpu_custom_call.1} parent=11 // pred_check
          %p210 = pneg %p82
        $region18: #{tpu_custom_call.1} parent=11 // pred_check_branch
          %212 = sbr.rel (%p210) target = $region20
        $region19: #{tpu_custom_call.1} parent=11 // pred_region
          %s213 = smul.u32 16, %s27
          %p214 = scmp.lt.s32.totalorder %s213, 15
          %s215 = scalar_select %p214, %s213, 15
          %s216 = smul.addr %s215, 8
          %s217 = scalar_lea.vmem %s1, %s216
          %s218 = smul.u32 16, %s27
        $region20: #{tpu_custom_call.1} parent=11 // pred_fallthru
          _
      $region12: #{tpu_custom_call.1} parent=5 // pred_fallthru
        _
      %p219 = scmp.lt.s32.totalorder %s18, 5
      // Predicated region
      $region21: #{tpu_custom_call.1} parent=5 // pred_check
        %p220 = pneg %p219
      $region22: #{tpu_custom_call.1} parent=5 // pred_check_branch
        %222 = sbr.rel (%p220) target = $region24
      $region23: #{tpu_custom_call.1} parent=5 // pred_region
        // Predicated region
        $region25: #{tpu_custom_call.1} parent=23 // pred_check
          %p223 = pneg %p102
        $region26: #{tpu_custom_call.1} parent=23 // pred_check_branch
          %225 = sbr.rel (%p223) target = $region28
        $region27: #{tpu_custom_call.1} parent=23 // pred_region
          %s226 = sand.u32 %s92, 1
          %s227 = scalar_lea.sflag [#allocation4], %s226
          %s228 = sand.u32 %s92, 1
          %s229 = smul.addr %s228, 256
          %s230 = scalar_lea.vmem [#allocation3], %s229
          %s232 = ssub.s32 4096, 4096
          %233 = vsyncadd %s227, %s232
          %s234 = smul.addr %s26, 32
          %s235 = smul.addr %s234, 128
          %s236 = scalar_lea.hbm %s2, %s235
          %s237 = sshll.u32 %s230, 4
          %s238 = int_to_ptr.vmem [resolvable:$true] %s237
          %243 = dma.hbm_to_vmem [thread:$0]  %s236, 4096, %s238, %s227, 256, 256, 16
        $region28: #{tpu_custom_call.1} parent=23 // pred_fallthru
          _
        // Predicated region
        $region29: #{tpu_custom_call.1} parent=23 // pred_check
          %p244 = pneg %p128
        $region30: #{tpu_custom_call.1} parent=23 // pred_check_branch
          %246 = sbr.rel (%p244) target = $region32
        $region31: #{tpu_custom_call.1} parent=23 // pred_region
          %s247 = sand.u32 %s18, 1
          %s248 = scalar_lea.sflag [#allocation7], %s247
          %s249 = sand.u32 %s118, 1
          %s250 = smul.addr %s249, 256
          %s251 = scalar_lea.vmem [#allocation6], %s250
          %s253 = ssub.s32 4096, 4096
          %254 = vsyncadd %s248, %s253
          %s255 = smul.addr %s26, 32
          %s256 = smul.addr %s255, 128
          %s257 = scalar_lea.hbm %s3, %s256
          %s258 = sshll.u32 %s251, 4
          %s259 = int_to_ptr.vmem [resolvable:$true] %s258
          %264 = dma.hbm_to_vmem [thread:$0]  %s257, 4096, %s259, %s248, 256, 256, 16
        $region32: #{tpu_custom_call.1} parent=23 // pred_fallthru
          _
        // Predicated region
        $region33: #{tpu_custom_call.1} parent=23 // pred_check
          %p265 = pneg %p154
        $region34: #{tpu_custom_call.1} parent=23 // pred_check_branch
          %267 = sbr.rel (%p265) target = $region36
        $region35: #{tpu_custom_call.1} parent=23 // pred_region
          %s268 = sand.u32 %s18, 1
          %s269 = scalar_lea.sflag [#allocation7], %s268
          %s270 = sand.u32 %s144, 1
          %s271 = smul.addr %s270, 256
          %s272 = scalar_lea.vmem [#allocation8], %s271
          %s274 = ssub.s32 4096, 4096
          %275 = vsyncadd %s269, %s274
          %s276 = smul.addr %s26, 32
          %s277 = smul.addr %s276, 128
          %s278 = scalar_lea.hbm %s4, %s277
          %s279 = sshll.u32 %s272, 4
          %s280 = int_to_ptr.vmem [resolvable:$true] %s279
          %285 = dma.hbm_to_vmem [thread:$0]  %s278, 4096, %s280, %s269, 128, 128, 8
        $region36: #{tpu_custom_call.1} parent=23 // pred_fallthru
          _
      $region24: #{tpu_custom_call.1} parent=5 // pred_fallthru
        _
      %p286 = scmp.le.s32.totalorder 1, %s18
      %p287 = scmp.lt.s32.totalorder %s18, 6
      %p288 = pnand %p286, %p287
      %p289 = pneg %p288
      // Predicated region
      $region37: #{tpu_custom_call.1} parent=5 // pred_check
        _
      $region38: #{tpu_custom_call.1} parent=5 // pred_check_branch
        %291 = sbr.rel (%p288) target = $region40
      $region39: #{tpu_custom_call.1} parent=5 // pred_region
        %s292 = ssub.s32 %s18, 1
        %s293 = sand.u32 %s95, 1
        %s294 = scalar_lea.sflag [#allocation4], %s293
        %s295 = sand.u32 %s95, 1
        %s296 = smul.addr %s295, 256
        %s297 = scalar_lea.vmem [#allocation3], %s296
        // Predicated region
        $region41: #{tpu_custom_call.1} parent=39 // pred_check
          %p298 = pneg %p108
        $region42: #{tpu_custom_call.1} parent=39 // pred_check_branch
          %300 = sbr.rel (%p298) target = $region44
        $region43: #{tpu_custom_call.1} parent=39 // pred_region
          %301 = dma.done %s294, 4096
        $region44: #{tpu_custom_call.1} parent=39 // pred_fallthru
          _
        %s302 = sand.u32 %s23, 1
        %s303 = scalar_lea.sflag [#allocation7], %s302
        %s304 = sand.u32 %s121, 1
        %s305 = smul.addr %s304, 256
        %s306 = scalar_lea.vmem [#allocation6], %s305
        // Predicated region
        $region45: #{tpu_custom_call.1} parent=39 // pred_check
          %p307 = pneg %p134
        $region46: #{tpu_custom_call.1} parent=39 // pred_check_branch
          %309 = sbr.rel (%p307) target = $region48
        $region47: #{tpu_custom_call.1} parent=39 // pred_region
          %310 = dma.done %s303, 4096
        $region48: #{tpu_custom_call.1} parent=39 // pred_fallthru
          _
        %s311 = sand.u32 %s23, 1
        %s312 = scalar_lea.sflag [#allocation7], %s311
        %s313 = sand.u32 %s147, 1
        %s314 = smul.addr %s313, 256
        %s315 = scalar_lea.vmem [#allocation8], %s314
        // Predicated region
        $region49: #{tpu_custom_call.1} parent=39 // pred_check
          %p316 = pneg %p160
        $region50: #{tpu_custom_call.1} parent=39 // pred_check_branch
          %318 = sbr.rel (%p316) target = $region52
        $region51: #{tpu_custom_call.1} parent=39 // pred_region
          %319 = dma.done %s312, 4096
        $region52: #{tpu_custom_call.1} parent=39 // pred_fallthru
          _
        %s320 = smul.u32 16, %s27
        %p321 = scmp.lt.s32.totalorder %s320, 15
        %s322 = scalar_select %p321, %s320, 15
        %s323 = smul.addr %s322, 8
        %s324 = scalar_lea.vmem %s0, %s323
        %p325 = pneg %p56
        %p326 = pneg %p53
        %s327 = smul.u32 16, %s27
        %p328 = scmp.lt.s32.totalorder %s327, 15
        %s329 = scalar_select %p328, %s327, 15
        %s330 = smul.addr %s329, 8
        %s331 = scalar_lea.vmem %s1, %s330
        %p332 = pneg %p82
        %p333 = pneg %p79
        %s334 = sand.u32 %s95, 1
        %s335 = scalar_lea.sflag [#allocation4], %s334
        %s336 = sand.u32 %s95, 1
        %s337 = smul.addr %s336, 256
        %s338 = scalar_lea.vmem [#allocation3], %s337
        %p339 = pneg %p108
        %p340 = pneg %p105
        %s341 = sand.u32 %s23, 1
        %s342 = scalar_lea.sflag [#allocation7], %s341
        %s343 = sand.u32 %s121, 1
        %s344 = smul.addr %s343, 256
        %s345 = scalar_lea.vmem [#allocation6], %s344
        %p346 = pneg %p134
        %p347 = pneg %p131
        %s348 = sand.u32 %s23, 1
        %s349 = scalar_lea.sflag [#allocation7], %s348
        %s350 = sand.u32 %s147, 1
        %s351 = smul.addr %s350, 256
        %s352 = scalar_lea.vmem [#allocation8], %s351
        %p353 = pneg %p160
        %p354 = pneg %p157
        %p355 = pneg %p186
        %p356 = pneg %p183
        %s357 = smul.u32 16, %s27
        %p358 = scmp.lt.s32.totalorder %s357, 15
        %s359 = scalar_select %p358, %s357, 15
        %s360 = smul.addr %s359, 8
        %s361 = scalar_lea.vmem %s0, %s360
        %s362 = smul.u32 16, %s27
        %s363 = smul.u32 16, %s27
        %p364 = scmp.lt.s32.totalorder %s363, 15
        %s365 = scalar_select %p364, %s363, 15
        %s366 = smul.addr %s365, 8
        %s367 = scalar_lea.vmem %s1, %s366
        %s368 = smul.u32 16, %s27
        %s369 = smul.u32 16, %s27
        %p370 = scmp.eq.s32.totalorder %s28, 0
        // Predicated region
        $region53: #{tpu_custom_call.1} parent=39 // pred_check
          %p371 = pneg %p370
        $region54: #{tpu_custom_call.1} parent=39 // pred_check_branch
          %373 = sbr.rel (%p371) target = $region56
        $region55: #{tpu_custom_call.1} parent=39 // pred_region
          %374 = vst [vmem:[#allocation2] sm:$0xff] 0.0
          %375 = vst [vmem:[#allocation2 + $0x8] sm:$0xff] 0.0
          %376 = vst [vmem:[#allocation2 + $0x10] sm:$0xff] 0.0
          %377 = vst [vmem:[#allocation2 + $0x18] sm:$0xff] 0.0
          %378 = vst [vmem:[#allocation2 + $0x20] sm:$0xff] 0.0
          %379 = vst [vmem:[#allocation2 + $0x28] sm:$0xff] 0.0
          %380 = vst [vmem:[#allocation2 + $0x30] sm:$0xff] 0.0
          %381 = vst [vmem:[#allocation2 + $0x38] sm:$0xff] 0.0
          %382 = vst [vmem:[#allocation2 + $0x40] sm:$0xff] 0.0
          %383 = vst [vmem:[#allocation2 + $0x48] sm:$0xff] 0.0
          %384 = vst [vmem:[#allocation2 + $0x50] sm:$0xff] 0.0
          %385 = vst [vmem:[#allocation2 + $0x58] sm:$0xff] 0.0
          %386 = vst [vmem:[#allocation2 + $0x60] sm:$0xff] 0.0
          %387 = vst [vmem:[#allocation2 + $0x68] sm:$0xff] 0.0
          %388 = vst [vmem:[#allocation2 + $0x70] sm:$0xff] 0.0
          %389 = vst [vmem:[#allocation2 + $0x78] sm:$0xff] 0.0
        $region56: #{tpu_custom_call.1} parent=39 // pred_fallthru
          _
        %v390 = vld [vmem:[%s361] sm:$0xff]
        %v391 = vld [vmem:[%s361 + $0x8] sm:$0xff]
        %v392 = vld [vmem:[%s361 + $0x10] sm:$0xff]
        %v393 = vld [vmem:[%s361 + $0x18] sm:$0xff]
        %v394 = vld [vmem:[%s361 + $0x20] sm:$0xff]
        %v395 = vld [vmem:[%s361 + $0x28] sm:$0xff]
        %v396 = vld [vmem:[%s361 + $0x30] sm:$0xff]
        %v397 = vld [vmem:[%s361 + $0x38] sm:$0xff]
        %v398 = vld [vmem:[%s361 + $0x40] sm:$0xff]
        %v399 = vld [vmem:[%s361 + $0x48] sm:$0xff]
        %v400 = vld [vmem:[%s361 + $0x50] sm:$0xff]
        %v401 = vld [vmem:[%s361 + $0x58] sm:$0xff]
        %v402 = vld [vmem:[%s361 + $0x60] sm:$0xff]
        %v403 = vld [vmem:[%s361 + $0x68] sm:$0xff]
        %v404 = vld [vmem:[%s361 + $0x70] sm:$0xff]
        %v405 = vld [vmem:[%s361 + $0x78] sm:$0xff]
        %v406 = vld [vmem:[%s297] sm:$0xff]
        %v407 = vld [vmem:[%s297 + $0x8] sm:$0xff]
        %v408 = vld [vmem:[%s297 + $0x10] sm:$0xff]
        %v409 = vld [vmem:[%s297 + $0x18] sm:$0xff]
        %v410 = vld [vmem:[%s297 + $0x20] sm:$0xff]
        %v411 = vld [vmem:[%s297 + $0x28] sm:$0xff]
        %v412 = vld [vmem:[%s297 + $0x30] sm:$0xff]
        %v413 = vld [vmem:[%s297 + $0x38] sm:$0xff]
        %v414 = vld [vmem:[%s297 + $0x40] sm:$0xff]
        %v415 = vld [vmem:[%s297 + $0x48] sm:$0xff]
        %v416 = vld [vmem:[%s297 + $0x50] sm:$0xff]
        %v417 = vld [vmem:[%s297 + $0x58] sm:$0xff]
        %v418 = vld [vmem:[%s297 + $0x60] sm:$0xff]
        %v419 = vld [vmem:[%s297 + $0x68] sm:$0xff]
        %v420 = vld [vmem:[%s297 + $0x70] sm:$0xff]
        %v421 = vld [vmem:[%s297 + $0x78] sm:$0xff]
        %v422 = vld [vmem:[%s297 + $0x80] sm:$0xff]
        %v423 = vld [vmem:[%s297 + $0x88] sm:$0xff]
        %v424 = vld [vmem:[%s297 + $0x90] sm:$0xff]
        %v425 = vld [vmem:[%s297 + $0x98] sm:$0xff]
        %v426 = vld [vmem:[%s297 + $0xa0] sm:$0xff]
        %v427 = vld [vmem:[%s297 + $0xa8] sm:$0xff]
        %v428 = vld [vmem:[%s297 + $0xb0] sm:$0xff]
        %v429 = vld [vmem:[%s297 + $0xb8] sm:$0xff]
        %v430 = vld [vmem:[%s297 + $0xc0] sm:$0xff]
        %v431 = vld [vmem:[%s297 + $0xc8] sm:$0xff]
        %v432 = vld [vmem:[%s297 + $0xd0] sm:$0xff]
        %v433 = vld [vmem:[%s297 + $0xd8] sm:$0xff]
        %v434 = vld [vmem:[%s297 + $0xe0] sm:$0xff]
        %v435 = vld [vmem:[%s297 + $0xe8] sm:$0xff]
        %v436 = vld [vmem:[%s297 + $0xf0] sm:$0xff]
        %v437 = vld [vmem:[%s297 + $0xf8] sm:$0xff]
        %438 = vmatprep.subr.mxu0 %v437
        %439 = vmatpush1.msra.mxu0 %v436
        %440 = vmatprep.subr.mxu0 %v435
        %441 = vmatpush1.msra.mxu0 %v434
        %442 = vmatprep.subr.mxu0 %v433
        %443 = vmatpush1.msra.mxu0 %v432
        %444 = vmatprep.subr.mxu0 %v431
        %445 = vmatpush1.msra.mxu0 %v430
        %446 = vmatprep.subr.mxu0 %v429
        %447 = vmatpush1.msra.mxu0 %v428
        %448 = vmatprep.subr.mxu0 %v427
        %449 = vmatpush1.msra.mxu0 %v426
        %450 = vmatprep.subr.mxu0 %v425
        %451 = vmatpush1.msra.mxu0 %v424
        %452 = vmatprep.subr.mxu0 %v423
        %453 = vmatpush1.msra.mxu0 %v422
        %454 = vmatprep.subr.mxu0 %v421
        %455 = vmatpush1.msra.mxu0 %v420
        %456 = vmatprep.subr.mxu0 %v419
        %457 = vmatpush1.msra.mxu0 %v418
        %458 = vmatprep.subr.mxu0 %v417
        %459 = vmatpush1.msra.mxu0 %v416
        %460 = vmatprep.subr.mxu0 %v415
        %461 = vmatpush1.msra.mxu0 %v414
        %462 = vmatprep.subr.mxu0 %v413
        %463 = vmatpush1.msra.mxu0 %v412
        %464 = vmatprep.subr.mxu0 %v411
        %465 = vmatpush1.msra.mxu0 %v410
        %466 = vmatprep.subr.mxu0 %v409
        %467 = vmatpush1.msra.mxu0 %v408
        %468 = vmatprep.subr.mxu0 %v407
        %469 = vmatpush1.msra.mxu0 %v406
        %470 = vmatprep.subr.mxu0 0.0
        %471 = vmatpush2.msra.mxu0 0.0
        %472 = vmatprep.subr.mxu0 0.0
        %473 = vmatpush2.msra.mxu0 0.0
        %474 = vmatprep.subr.mxu0 0.0
        %475 = vmatpush2.msra.mxu0 0.0
        %476 = vmatprep.subr.mxu0 0.0
        %477 = vmatpush2.msra.mxu0 0.0
        %478 = vmatprep.subr.mxu0 0.0
        %479 = vmatpush2.msra.mxu0 0.0
        %480 = vmatprep.subr.mxu0 0.0
        %481 = vmatpush2.msra.mxu0 0.0
        %482 = vmatprep.subr.mxu0 0.0
        %483 = vmatpush2.msra.mxu0 0.0
        %484 = vmatprep.subr.mxu0 0.0
        %485 = vmatpush2.msra.mxu0 0.0
        %486 = vmatprep.subr.mxu0 0.0
        %487 = vmatpush2.msra.mxu0 0.0
        %488 = vmatprep.subr.mxu0 0.0
        %489 = vmatpush2.msra.mxu0 0.0
        %490 = vmatprep.subr.mxu0 0.0
        %491 = vmatpush2.msra.mxu0 0.0
        %492 = vmatprep.subr.mxu0 0.0
        %493 = vmatpush2.msra.mxu0 0.0
        %494 = vmatprep.subr.mxu0 0.0
        %495 = vmatpush2.msra.mxu0 0.0
        %496 = vmatprep.subr.mxu0 0.0
        %497 = vmatpush2.msra.mxu0 0.0
        %498 = vmatprep.subr.mxu0 0.0
        %499 = vmatpush2.msra.mxu0 0.0
        %500 = vmatprep.subr.mxu0 0.0
        %501 = vmatpush2.msra.mxu0 0.0
        %502 = vmatprep.mubr.f32.mxu0 0.0
        %503 = vmatmul.mubr.f32.gmra.mxu0 %v390
        %v504 = vpop.f32.mrf.mxu0
        %v505 = vadd.f32 0.0, %v504
        %v506 = vpop.f32.mrf.mxu0
        %v507 = vadd.f32 0.0, %v506
        %508 = vmatprep.mubr.f32.mxu0 0.0
        %509 = vmatmul.mubr.f32.gmra.mxu0 %v391
        %v510 = vpop.f32.mrf.mxu0
        %v511 = vadd.f32 0.0, %v510
        %v512 = vpop.f32.mrf.mxu0
        %v513 = vadd.f32 0.0, %v512
        %514 = vmatprep.mubr.f32.mxu0 0.0
        %515 = vmatmul.mubr.f32.gmra.mxu0 %v392
        %v516 = vpop.f32.mrf.mxu0
        %v517 = vadd.f32 0.0, %v516
        %v518 = vpop.f32.mrf.mxu0
        %v519 = vadd.f32 0.0, %v518
        %520 = vmatprep.mubr.f32.mxu0 0.0
        %521 = vmatmul.mubr.f32.gmra.mxu0 %v393
        %v522 = vpop.f32.mrf.mxu0
        %v523 = vadd.f32 0.0, %v522
        %v524 = vpop.f32.mrf.mxu0
        %v525 = vadd.f32 0.0, %v524
        %526 = vmatprep.mubr.f32.mxu0 0.0
        %527 = vmatmul.mubr.f32.gmra.mxu0 %v394
        %v528 = vpop.f32.mrf.mxu0
        %v529 = vadd.f32 0.0, %v528
        %v530 = vpop.f32.mrf.mxu0
        %v531 = vadd.f32 0.0, %v530
        %532 = vmatprep.mubr.f32.mxu0 0.0
        %533 = vmatmul.mubr.f32.gmra.mxu0 %v395
        %v534 = vpop.f32.mrf.mxu0
        %v535 = vadd.f32 0.0, %v534
        %v536 = vpop.f32.mrf.mxu0
        %v537 = vadd.f32 0.0, %v536
        %538 = vmatprep.mubr.f32.mxu0 0.0
        %539 = vmatmul.mubr.f32.gmra.mxu0 %v396
        %v540 = vpop.f32.mrf.mxu0
        %v541 = vadd.f32 0.0, %v540
        %v542 = vpop.f32.mrf.mxu0
        %v543 = vadd.f32 0.0, %v542
        %544 = vmatprep.mubr.f32.mxu0 0.0
        %545 = vmatmul.mubr.f32.gmra.mxu0 %v397
        %v546 = vpop.f32.mrf.mxu0
        %v547 = vadd.f32 0.0, %v546
        %v548 = vpop.f32.mrf.mxu0
        %v549 = vadd.f32 0.0, %v548
        %550 = vmatprep.mubr.f32.mxu0 0.0
        %551 = vmatmul.mubr.f32.gmra.mxu0 %v398
        %v552 = vpop.f32.mrf.mxu0
        %v553 = vadd.f32 0.0, %v552
        %v554 = vpop.f32.mrf.mxu0
        %v555 = vadd.f32 0.0, %v554
        %556 = vmatprep.mubr.f32.mxu0 0.0
        %557 = vmatmul.mubr.f32.gmra.mxu0 %v399
        %v558 = vpop.f32.mrf.mxu0
        %v559 = vadd.f32 0.0, %v558
        %v560 = vpop.f32.mrf.mxu0
        %v561 = vadd.f32 0.0, %v560
        %562 = vmatprep.mubr.f32.mxu0 0.0
        %563 = vmatmul.mubr.f32.gmra.mxu0 %v400
        %v564 = vpop.f32.mrf.mxu0
        %v565 = vadd.f32 0.0, %v564
        %v566 = vpop.f32.mrf.mxu0
        %v567 = vadd.f32 0.0, %v566
        %568 = vmatprep.mubr.f32.mxu0 0.0
        %569 = vmatmul.mubr.f32.gmra.mxu0 %v401
        %v570 = vpop.f32.mrf.mxu0
        %v571 = vadd.f32 0.0, %v570
        %v572 = vpop.f32.mrf.mxu0
        %v573 = vadd.f32 0.0, %v572
        %574 = vmatprep.mubr.f32.mxu0 0.0
        %575 = vmatmul.mubr.f32.gmra.mxu0 %v402
        %v576 = vpop.f32.mrf.mxu0
        %v577 = vadd.f32 0.0, %v576
        %v578 = vpop.f32.mrf.mxu0
        %v579 = vadd.f32 0.0, %v578
        %580 = vmatprep.mubr.f32.mxu0 0.0
        %581 = vmatmul.mubr.f32.gmra.mxu0 %v403
        %v582 = vpop.f32.mrf.mxu0
        %v583 = vadd.f32 0.0, %v582
        %v584 = vpop.f32.mrf.mxu0
        %v585 = vadd.f32 0.0, %v584
        %586 = vmatprep.mubr.f32.mxu0 0.0
        %587 = vmatmul.mubr.f32.gmra.mxu0 %v404
        %v588 = vpop.f32.mrf.mxu0
        %v589 = vadd.f32 0.0, %v588
        %v590 = vpop.f32.mrf.mxu0
        %v591 = vadd.f32 0.0, %v590
        %592 = vmatprep.mubr.f32.mxu0 0.0
        %593 = vmatmul.mubr.f32.gmra.mxu0 %v405
        %v594 = vpop.f32.mrf.mxu0
        %v595 = vadd.f32 0.0, %v594
        %v596 = vpop.f32.mrf.mxu0
        %v597 = vadd.f32 0.0, %v596
        %598 = vdwg.mxu0
        %v599 = vld [vmem:[%s306] sm:$0xff]
        %v600 = vld [vmem:[%s306 + $0x8] sm:$0xff]
        %v601 = vld [vmem:[%s306 + $0x10] sm:$0xff]
        %v602 = vld [vmem:[%s306 + $0x18] sm:$0xff]
        %v603 = vld [vmem:[%s306 + $0x20] sm:$0xff]
        %v604 = vld [vmem:[%s306 + $0x28] sm:$0xff]
        %v605 = vld [vmem:[%s306 + $0x30] sm:$0xff]
        %v606 = vld [vmem:[%s306 + $0x38] sm:$0xff]
        %v607 = vld [vmem:[%s306 + $0x40] sm:$0xff]
        %v608 = vld [vmem:[%s306 + $0x48] sm:$0xff]
        %v609 = vld [vmem:[%s306 + $0x50] sm:$0xff]
        %v610 = vld [vmem:[%s306 + $0x58] sm:$0xff]
        %v611 = vld [vmem:[%s306 + $0x60] sm:$0xff]
        %v612 = vld [vmem:[%s306 + $0x68] sm:$0xff]
        %v613 = vld [vmem:[%s306 + $0x70] sm:$0xff]
        %v614 = vld [vmem:[%s306 + $0x78] sm:$0xff]
        %v615 = vld [vmem:[%s306 + $0x80] sm:$0xff]
        %v616 = vld [vmem:[%s306 + $0x88] sm:$0xff]
        %v617 = vld [vmem:[%s306 + $0x90] sm:$0xff]
        %v618 = vld [vmem:[%s306 + $0x98] sm:$0xff]
        %v619 = vld [vmem:[%s306 + $0xa0] sm:$0xff]
        %v620 = vld [vmem:[%s306 + $0xa8] sm:$0xff]
        %v621 = vld [vmem:[%s306 + $0xb0] sm:$0xff]
        %v622 = vld [vmem:[%s306 + $0xb8] sm:$0xff]
        %v623 = vld [vmem:[%s306 + $0xc0] sm:$0xff]
        %v624 = vld [vmem:[%s306 + $0xc8] sm:$0xff]
        %v625 = vld [vmem:[%s306 + $0xd0] sm:$0xff]
        %v626 = vld [vmem:[%s306 + $0xd8] sm:$0xff]
        %v627 = vld [vmem:[%s306 + $0xe0] sm:$0xff]
        %v628 = vld [vmem:[%s306 + $0xe8] sm:$0xff]
        %v629 = vld [vmem:[%s306 + $0xf0] sm:$0xff]
        %v630 = vld [vmem:[%s306 + $0xf8] sm:$0xff]
        %631 = vmatprep.subr.mxu0 %v630
        %632 = vmatpush1.msra.mxu0 %v629
        %633 = vmatprep.subr.mxu0 %v628
        %634 = vmatpush1.msra.mxu0 %v627
        %635 = vmatprep.subr.mxu0 %v626
        %636 = vmatpush1.msra.mxu0 %v625
        %637 = vmatprep.subr.mxu0 %v624
        %638 = vmatpush1.msra.mxu0 %v623
        %639 = vmatprep.subr.mxu0 %v622
        %640 = vmatpush1.msra.mxu0 %v621
        %641 = vmatprep.subr.mxu0 %v620
        %642 = vmatpush1.msra.mxu0 %v619
        %643 = vmatprep.subr.mxu0 %v618
        %644 = vmatpush1.msra.mxu0 %v617
        %645 = vmatprep.subr.mxu0 %v616
        %646 = vmatpush1.msra.mxu0 %v615
        %647 = vmatprep.subr.mxu0 %v614
        %648 = vmatpush1.msra.mxu0 %v613
        %649 = vmatprep.subr.mxu0 %v612
        %650 = vmatpush1.msra.mxu0 %v611
        %651 = vmatprep.subr.mxu0 %v610
        %652 = vmatpush1.msra.mxu0 %v609
        %653 = vmatprep.subr.mxu0 %v608
        %654 = vmatpush1.msra.mxu0 %v607
        %655 = vmatprep.subr.mxu0 %v606
        %656 = vmatpush1.msra.mxu0 %v605
        %657 = vmatprep.subr.mxu0 %v604
        %658 = vmatpush1.msra.mxu0 %v603
        %659 = vmatprep.subr.mxu0 %v602
        %660 = vmatpush1.msra.mxu0 %v601
        %661 = vmatprep.subr.mxu0 %v600
        %662 = vmatpush1.msra.mxu0 %v599
        %663 = vmatprep.subr.mxu0 0.0
        %664 = vmatpush2.msra.mxu0 0.0
        %665 = vmatprep.subr.mxu0 0.0
        %666 = vmatpush2.msra.mxu0 0.0
        %667 = vmatprep.subr.mxu0 0.0
        %668 = vmatpush2.msra.mxu0 0.0
        %669 = vmatprep.subr.mxu0 0.0
        %670 = vmatpush2.msra.mxu0 0.0
        %671 = vmatprep.subr.mxu0 0.0
        %672 = vmatpush2.msra.mxu0 0.0
        %673 = vmatprep.subr.mxu0 0.0
        %674 = vmatpush2.msra.mxu0 0.0
        %675 = vmatprep.subr.mxu0 0.0
        %676 = vmatpush2.msra.mxu0 0.0
        %677 = vmatprep.subr.mxu0 0.0
        %678 = vmatpush2.msra.mxu0 0.0
        %679 = vmatprep.subr.mxu0 0.0
        %680 = vmatpush2.msra.mxu0 0.0
        %681 = vmatprep.subr.mxu0 0.0
        %682 = vmatpush2.msra.mxu0 0.0
        %683 = vmatprep.subr.mxu0 0.0
        %684 = vmatpush2.msra.mxu0 0.0
        %685 = vmatprep.subr.mxu0 0.0
        %686 = vmatpush2.msra.mxu0 0.0
        %687 = vmatprep.subr.mxu0 0.0
        %688 = vmatpush2.msra.mxu0 0.0
        %689 = vmatprep.subr.mxu0 0.0
        %690 = vmatpush2.msra.mxu0 0.0
        %691 = vmatprep.subr.mxu0 0.0
        %692 = vmatpush2.msra.mxu0 0.0
        %693 = vmatprep.subr.mxu0 0.0
        %694 = vmatpush2.msra.mxu0 0.0
        %695 = vmatprep.mubr.f32.mxu0 0.0
        %696 = vmatmul.mubr.f32.gmra.mxu0 %v390
        %v697 = vpop.f32.mrf.mxu0
        %v698 = vadd.f32 0.0, %v697
        %v699 = vpop.f32.mrf.mxu0
        %v700 = vadd.f32 0.0, %v699
        %701 = vmatprep.mubr.f32.mxu0 0.0
        %702 = vmatmul.mubr.f32.gmra.mxu0 %v391
        %v703 = vpop.f32.mrf.mxu0
        %v704 = vadd.f32 0.0, %v703
        %v705 = vpop.f32.mrf.mxu0
        %v706 = vadd.f32 0.0, %v705
        %707 = vmatprep.mubr.f32.mxu0 0.0
        %708 = vmatmul.mubr.f32.gmra.mxu0 %v392
        %v709 = vpop.f32.mrf.mxu0
        %v710 = vadd.f32 0.0, %v709
        %v711 = vpop.f32.mrf.mxu0
        %v712 = vadd.f32 0.0, %v711
        %713 = vmatprep.mubr.f32.mxu0 0.0
        %714 = vmatmul.mubr.f32.gmra.mxu0 %v393
        %v715 = vpop.f32.mrf.mxu0
        %v716 = vadd.f32 0.0, %v715
        %v717 = vpop.f32.mrf.mxu0
        %v718 = vadd.f32 0.0, %v717
        %719 = vmatprep.mubr.f32.mxu0 0.0
        %720 = vmatmul.mubr.f32.gmra.mxu0 %v394
        %v721 = vpop.f32.mrf.mxu0
        %v722 = vadd.f32 0.0, %v721
        %v723 = vpop.f32.mrf.mxu0
        %v724 = vadd.f32 0.0, %v723
        %725 = vmatprep.mubr.f32.mxu0 0.0
        %726 = vmatmul.mubr.f32.gmra.mxu0 %v395
        %v727 = vpop.f32.mrf.mxu0
        %v728 = vadd.f32 0.0, %v727
        %v729 = vpop.f32.mrf.mxu0
        %v730 = vadd.f32 0.0, %v729
        %731 = vmatprep.mubr.f32.mxu0 0.0
        %732 = vmatmul.mubr.f32.gmra.mxu0 %v396
        %v733 = vpop.f32.mrf.mxu0
        %v734 = vadd.f32 0.0, %v733
        %v735 = vpop.f32.mrf.mxu0
        %v736 = vadd.f32 0.0, %v735
        %737 = vmatprep.mubr.f32.mxu0 0.0
        %738 = vmatmul.mubr.f32.gmra.mxu0 %v397
        %v739 = vpop.f32.mrf.mxu0
        %v740 = vadd.f32 0.0, %v739
        %v741 = vpop.f32.mrf.mxu0
        %v742 = vadd.f32 0.0, %v741
        %743 = vmatprep.mubr.f32.mxu0 0.0
        %744 = vmatmul.mubr.f32.gmra.mxu0 %v398
        %v745 = vpop.f32.mrf.mxu0
        %v746 = vadd.f32 0.0, %v745
        %v747 = vpop.f32.mrf.mxu0
        %v748 = vadd.f32 0.0, %v747
        %749 = vmatprep.mubr.f32.mxu0 0.0
        %750 = vmatmul.mubr.f32.gmra.mxu0 %v399
        %v751 = vpop.f32.mrf.mxu0
        %v752 = vadd.f32 0.0, %v751
        %v753 = vpop.f32.mrf.mxu0
        %v754 = vadd.f32 0.0, %v753
        %755 = vmatprep.mubr.f32.mxu0 0.0
        %756 = vmatmul.mubr.f32.gmra.mxu0 %v400
        %v757 = vpop.f32.mrf.mxu0
        %v758 = vadd.f32 0.0, %v757
        %v759 = vpop.f32.mrf.mxu0
        %v760 = vadd.f32 0.0, %v759
        %761 = vmatprep.mubr.f32.mxu0 0.0
        %762 = vmatmul.mubr.f32.gmra.mxu0 %v401
        %v763 = vpop.f32.mrf.mxu0
        %v764 = vadd.f32 0.0, %v763
        %v765 = vpop.f32.mrf.mxu0
        %v766 = vadd.f32 0.0, %v765
        %767 = vmatprep.mubr.f32.mxu0 0.0
        %768 = vmatmul.mubr.f32.gmra.mxu0 %v402
        %v769 = vpop.f32.mrf.mxu0
        %v770 = vadd.f32 0.0, %v769
        %v771 = vpop.f32.mrf.mxu0
        %v772 = vadd.f32 0.0, %v771
        %773 = vmatprep.mubr.f32.mxu0 0.0
        %774 = vmatmul.mubr.f32.gmra.mxu0 %v403
        %v775 = vpop.f32.mrf.mxu0
        %v776 = vadd.f32 0.0, %v775
        %v777 = vpop.f32.mrf.mxu0
        %v778 = vadd.f32 0.0, %v777
        %779 = vmatprep.mubr.f32.mxu0 0.0
        %780 = vmatmul.mubr.f32.gmra.mxu0 %v404
        %v781 = vpop.f32.mrf.mxu0
        %v782 = vadd.f32 0.0, %v781
        %v783 = vpop.f32.mrf.mxu0
        %v784 = vadd.f32 0.0, %v783
        %785 = vmatprep.mubr.f32.mxu0 0.0
        %786 = vmatmul.mubr.f32.gmra.mxu0 %v405
        %v787 = vpop.f32.mrf.mxu0
        %v788 = vadd.f32 0.0, %v787
        %v789 = vpop.f32.mrf.mxu0
        %v790 = vadd.f32 0.0, %v789
        %791 = vdwg.mxu0
        %v792 = vxor.u32 %v505, 2147483648
        %v793 = vxor.u32 %v507, 2147483648
        %v794 = vxor.u32 %v511, 2147483648
        %v795 = vxor.u32 %v513, 2147483648
        %v796 = vxor.u32 %v517, 2147483648
        %v797 = vxor.u32 %v519, 2147483648
        %v798 = vxor.u32 %v523, 2147483648
        %v799 = vxor.u32 %v525, 2147483648
        %v800 = vxor.u32 %v529, 2147483648
        %v801 = vxor.u32 %v531, 2147483648
        %v802 = vxor.u32 %v535, 2147483648
        %v803 = vxor.u32 %v537, 2147483648
        %v804 = vxor.u32 %v541, 2147483648
        %v805 = vxor.u32 %v543, 2147483648
        %v806 = vxor.u32 %v547, 2147483648
        %v807 = vxor.u32 %v549, 2147483648
        %v808 = vxor.u32 %v553, 2147483648
        %v809 = vxor.u32 %v555, 2147483648
        %v810 = vxor.u32 %v559, 2147483648
        %v811 = vxor.u32 %v561, 2147483648
        %v812 = vxor.u32 %v565, 2147483648
        %v813 = vxor.u32 %v567, 2147483648
        %v814 = vxor.u32 %v571, 2147483648
        %v815 = vxor.u32 %v573, 2147483648
        %v816 = vxor.u32 %v577, 2147483648
        %v817 = vxor.u32 %v579, 2147483648
        %v818 = vxor.u32 %v583, 2147483648
        %v819 = vxor.u32 %v585, 2147483648
        %v820 = vxor.u32 %v589, 2147483648
        %v821 = vxor.u32 %v591, 2147483648
        %v822 = vxor.u32 %v595, 2147483648
        %v823 = vxor.u32 %v597, 2147483648
        %v824 = vmul.f32 %v792, 1.442695
        %v825 = vpow.pop %v824
        %v826 = vmul.f32 %v793, 1.442695
        %v827 = vpow.pop %v826
        %v828 = vmul.f32 %v794, 1.442695
        %v829 = vpow.pop %v828
        %v830 = vmul.f32 %v795, 1.442695
        %v831 = vpow.pop %v830
        %v832 = vmul.f32 %v796, 1.442695
        %v833 = vpow.pop %v832
        %v834 = vmul.f32 %v797, 1.442695
        %v835 = vpow.pop %v834
        %v836 = vmul.f32 %v798, 1.442695
        %v837 = vpow.pop %v836
        %v838 = vmul.f32 %v799, 1.442695
        %v839 = vpow.pop %v838
        %v840 = vmul.f32 %v800, 1.442695
        %v841 = vpow.pop %v840
        %v842 = vmul.f32 %v801, 1.442695
        %v843 = vpow.pop %v842
        %v844 = vmul.f32 %v802, 1.442695
        %v845 = vpow.pop %v844
        %v846 = vmul.f32 %v803, 1.442695
        %v847 = vpow.pop %v846
        %v848 = vmul.f32 %v804, 1.442695
        %v849 = vpow.pop %v848
        %v850 = vmul.f32 %v805, 1.442695
        %v851 = vpow.pop %v850
        %v852 = vmul.f32 %v806, 1.442695
        %v853 = vpow.pop %v852
        %v854 = vmul.f32 %v807, 1.442695
        %v855 = vpow.pop %v854
        %v856 = vmul.f32 %v808, 1.442695
        %v857 = vpow.pop %v856
        %v858 = vmul.f32 %v809, 1.442695
        %v859 = vpow.pop %v858
        %v860 = vmul.f32 %v810, 1.442695
        %v861 = vpow.pop %v860
        %v862 = vmul.f32 %v811, 1.442695
        %v863 = vpow.pop %v862
        %v864 = vmul.f32 %v812, 1.442695
        %v865 = vpow.pop %v864
        %v866 = vmul.f32 %v813, 1.442695
        %v867 = vpow.pop %v866
        %v868 = vmul.f32 %v814, 1.442695
        %v869 = vpow.pop %v868
        %v870 = vmul.f32 %v815, 1.442695
        %v871 = vpow.pop %v870
        %v872 = vmul.f32 %v816, 1.442695
        %v873 = vpow.pop %v872
        %v874 = vmul.f32 %v817, 1.442695
        %v875 = vpow.pop %v874
        %v876 = vmul.f32 %v818, 1.442695
        %v877 = vpow.pop %v876
        %v878 = vmul.f32 %v819, 1.442695
        %v879 = vpow.pop %v878
        %v880 = vmul.f32 %v820, 1.442695
        %v881 = vpow.pop %v880
        %v882 = vmul.f32 %v821, 1.442695
        %v883 = vpow.pop %v882
        %v884 = vmul.f32 %v822, 1.442695
        %v885 = vpow.pop %v884
        %v886 = vmul.f32 %v823, 1.442695
        %v887 = vpow.pop %v886
        %v888 = vadd.f32 %v825, 1.0
        %v889 = vadd.f32 %v827, 1.0
        %v890 = vadd.f32 %v829, 1.0
        %v891 = vadd.f32 %v831, 1.0
        %v892 = vadd.f32 %v833, 1.0
        %v893 = vadd.f32 %v835, 1.0
        %v894 = vadd.f32 %v837, 1.0
        %v895 = vadd.f32 %v839, 1.0
        %v896 = vadd.f32 %v841, 1.0
        %v897 = vadd.f32 %v843, 1.0
        %v898 = vadd.f32 %v845, 1.0
        %v899 = vadd.f32 %v847, 1.0
        %v900 = vadd.f32 %v849, 1.0
        %v901 = vadd.f32 %v851, 1.0
        %v902 = vadd.f32 %v853, 1.0
        %v903 = vadd.f32 %v855, 1.0
        %v904 = vadd.f32 %v857, 1.0
        %v905 = vadd.f32 %v859, 1.0
        %v906 = vadd.f32 %v861, 1.0
        %v907 = vadd.f32 %v863, 1.0
        %v908 = vadd.f32 %v865, 1.0
        %v909 = vadd.f32 %v867, 1.0
        %v910 = vadd.f32 %v869, 1.0
        %v911 = vadd.f32 %v871, 1.0
        %v912 = vadd.f32 %v873, 1.0
        %v913 = vadd.f32 %v875, 1.0
        %v914 = vadd.f32 %v877, 1.0
        %v915 = vadd.f32 %v879, 1.0
        %v916 = vadd.f32 %v881, 1.0
        %v917 = vadd.f32 %v883, 1.0
        %v918 = vadd.f32 %v885, 1.0
        %v919 = vadd.f32 %v887, 1.0
        %v920 = vrcp.pop %v888
        %v921 = vmul.f32 1.0, %v920
        %v922 = vrcp.pop %v889
        %v923 = vmul.f32 1.0, %v922
        %v924 = vrcp.pop %v890
        %v925 = vmul.f32 1.0, %v924
        %v926 = vrcp.pop %v891
        %v927 = vmul.f32 1.0, %v926
        %v928 = vrcp.pop %v892
        %v929 = vmul.f32 1.0, %v928
        %v930 = vrcp.pop %v893
        %v931 = vmul.f32 1.0, %v930
        %v932 = vrcp.pop %v894
        %v933 = vmul.f32 1.0, %v932
        %v934 = vrcp.pop %v895
        %v935 = vmul.f32 1.0, %v934
        %v936 = vrcp.pop %v896
        %v937 = vmul.f32 1.0, %v936
        %v938 = vrcp.pop %v897
        %v939 = vmul.f32 1.0, %v938
        %v940 = vrcp.pop %v898
        %v941 = vmul.f32 1.0, %v940
        %v942 = vrcp.pop %v899
        %v943 = vmul.f32 1.0, %v942
        %v944 = vrcp.pop %v900
        %v945 = vmul.f32 1.0, %v944
        %v946 = vrcp.pop %v901
        %v947 = vmul.f32 1.0, %v946
        %v948 = vrcp.pop %v902
        %v949 = vmul.f32 1.0, %v948
        %v950 = vrcp.pop %v903
        %v951 = vmul.f32 1.0, %v950
        %v952 = vrcp.pop %v904
        %v953 = vmul.f32 1.0, %v952
        %v954 = vrcp.pop %v905
        %v955 = vmul.f32 1.0, %v954
        %v956 = vrcp.pop %v906
        %v957 = vmul.f32 1.0, %v956
        %v958 = vrcp.pop %v907
        %v959 = vmul.f32 1.0, %v958
        %v960 = vrcp.pop %v908
        %v961 = vmul.f32 1.0, %v960
        %v962 = vrcp.pop %v909
        %v963 = vmul.f32 1.0, %v962
        %v964 = vrcp.pop %v910
        %v965 = vmul.f32 1.0, %v964
        %v966 = vrcp.pop %v911
        %v967 = vmul.f32 1.0, %v966
        %v968 = vrcp.pop %v912
        %v969 = vmul.f32 1.0, %v968
        %v970 = vrcp.pop %v913
        %v971 = vmul.f32 1.0, %v970
        %v972 = vrcp.pop %v914
        %v973 = vmul.f32 1.0, %v972
        %v974 = vrcp.pop %v915
        %v975 = vmul.f32 1.0, %v974
        %v976 = vrcp.pop %v916
        %v977 = vmul.f32 1.0, %v976
        %v978 = vrcp.pop %v917
        %v979 = vmul.f32 1.0, %v978
        %v980 = vrcp.pop %v918
        %v981 = vmul.f32 1.0, %v980
        %v982 = vrcp.pop %v919
        %v983 = vmul.f32 1.0, %v982
        %v984 = vmul.f32 %v505, %v921
        %v985 = vmul.f32 %v507, %v923
        %v986 = vmul.f32 %v511, %v925
        %v987 = vmul.f32 %v513, %v927
        %v988 = vmul.f32 %v517, %v929
        %v989 = vmul.f32 %v519, %v931
        %v990 = vmul.f32 %v523, %v933
        %v991 = vmul.f32 %v525, %v935
        %v992 = vmul.f32 %v529, %v937
        %v993 = vmul.f32 %v531, %v939
        %v994 = vmul.f32 %v535, %v941
        %v995 = vmul.f32 %v537, %v943
        %v996 = vmul.f32 %v541, %v945
        %v997 = vmul.f32 %v543, %v947
        %v998 = vmul.f32 %v547, %v949
        %v999 = vmul.f32 %v549, %v951
        %v1000 = vmul.f32 %v553, %v953
        %v1001 = vmul.f32 %v555, %v955
        %v1002 = vmul.f32 %v559, %v957
        %v1003 = vmul.f32 %v561, %v959
        %v1004 = vmul.f32 %v565, %v961
        %v1005 = vmul.f32 %v567, %v963
        %v1006 = vmul.f32 %v571, %v965
        %v1007 = vmul.f32 %v573, %v967
        %v1008 = vmul.f32 %v577, %v969
        %v1009 = vmul.f32 %v579, %v971
        %v1010 = vmul.f32 %v583, %v973
        %v1011 = vmul.f32 %v585, %v975
        %v1012 = vmul.f32 %v589, %v977
        %v1013 = vmul.f32 %v591, %v979
        %v1014 = vmul.f32 %v595, %v981
        %v1015 = vmul.f32 %v597, %v983
        %v1016 = vmul.f32 %v984, %v698
        %v1017 = vmul.f32 %v985, %v700
        %v1018 = vmul.f32 %v986, %v704
        %v1019 = vmul.f32 %v987, %v706
        %v1020 = vmul.f32 %v988, %v710
        %v1021 = vmul.f32 %v989, %v712
        %v1022 = vmul.f32 %v990, %v716
        %v1023 = vmul.f32 %v991, %v718
        %v1024 = vmul.f32 %v992, %v722
        %v1025 = vmul.f32 %v993, %v724
        %v1026 = vmul.f32 %v994, %v728
        %v1027 = vmul.f32 %v995, %v730
        %v1028 = vmul.f32 %v996, %v734
        %v1029 = vmul.f32 %v997, %v736
        %v1030 = vmul.f32 %v998, %v740
        %v1031 = vmul.f32 %v999, %v742
        %v1032 = vmul.f32 %v1000, %v746
        %v1033 = vmul.f32 %v1001, %v748
        %v1034 = vmul.f32 %v1002, %v752
        %v1035 = vmul.f32 %v1003, %v754
        %v1036 = vmul.f32 %v1004, %v758
        %v1037 = vmul.f32 %v1005, %v760
        %v1038 = vmul.f32 %v1006, %v764
        %v1039 = vmul.f32 %v1007, %v766
        %v1040 = vmul.f32 %v1008, %v770
        %v1041 = vmul.f32 %v1009, %v772
        %v1042 = vmul.f32 %v1010, %v776
        %v1043 = vmul.f32 %v1011, %v778
        %v1044 = vmul.f32 %v1012, %v782
        %v1045 = vmul.f32 %v1013, %v784
        %v1046 = vmul.f32 %v1014, %v788
        %v1047 = vmul.f32 %v1015, %v790
        %v1048 = vld [vmem:[%s315] sm:$0xff]
        %v1049 = vld [vmem:[%s315 + $0x8] sm:$0xff]
        %v1050 = vld [vmem:[%s315 + $0x10] sm:$0xff]
        %v1051 = vld [vmem:[%s315 + $0x18] sm:$0xff]
        %v1052 = vld [vmem:[%s315 + $0x20] sm:$0xff]
        %v1053 = vld [vmem:[%s315 + $0x28] sm:$0xff]
        %v1054 = vld [vmem:[%s315 + $0x30] sm:$0xff]
        %v1055 = vld [vmem:[%s315 + $0x38] sm:$0xff]
        %v1056 = vld [vmem:[%s315 + $0x40] sm:$0xff]
        %v1057 = vld [vmem:[%s315 + $0x48] sm:$0xff]
        %v1058 = vld [vmem:[%s315 + $0x50] sm:$0xff]
        %v1059 = vld [vmem:[%s315 + $0x58] sm:$0xff]
        %v1060 = vld [vmem:[%s315 + $0x60] sm:$0xff]
        %v1061 = vld [vmem:[%s315 + $0x68] sm:$0xff]
        %v1062 = vld [vmem:[%s315 + $0x70] sm:$0xff]
        %v1063 = vld [vmem:[%s315 + $0x78] sm:$0xff]
        %v1064 = vld [vmem:[%s315 + $0x80] sm:$0xff]
        %v1065 = vld [vmem:[%s315 + $0x88] sm:$0xff]
        %v1066 = vld [vmem:[%s315 + $0x90] sm:$0xff]
        %v1067 = vld [vmem:[%s315 + $0x98] sm:$0xff]
        %v1068 = vld [vmem:[%s315 + $0xa0] sm:$0xff]
        %v1069 = vld [vmem:[%s315 + $0xa8] sm:$0xff]
        %v1070 = vld [vmem:[%s315 + $0xb0] sm:$0xff]
        %v1071 = vld [vmem:[%s315 + $0xb8] sm:$0xff]
        %v1072 = vld [vmem:[%s315 + $0xc0] sm:$0xff]
        %v1073 = vld [vmem:[%s315 + $0xc8] sm:$0xff]
        %v1074 = vld [vmem:[%s315 + $0xd0] sm:$0xff]
        %v1075 = vld [vmem:[%s315 + $0xd8] sm:$0xff]
        %v1076 = vld [vmem:[%s315 + $0xe0] sm:$0xff]
        %v1077 = vld [vmem:[%s315 + $0xe8] sm:$0xff]
        %v1078 = vld [vmem:[%s315 + $0xf0] sm:$0xff]
        %v1079 = vld [vmem:[%s315 + $0xf8] sm:$0xff]
        %1080 = vmatprep.subr.mxu0 0.0
        %1081 = vmatpush1.msra.mxu0 %v1063
        %1082 = vmatprep.subr.mxu0 0.0
        %1083 = vmatpush1.msra.mxu0 %v1062
        %1084 = vmatprep.subr.mxu0 0.0
        %1085 = vmatpush1.msra.mxu0 %v1061
        %1086 = vmatprep.subr.mxu0 0.0
        %1087 = vmatpush1.msra.mxu0 %v1060
        %1088 = vmatprep.subr.mxu0 0.0
        %1089 = vmatpush1.msra.mxu0 %v1059
        %1090 = vmatprep.subr.mxu0 0.0
        %1091 = vmatpush1.msra.mxu0 %v1058
        %1092 = vmatprep.subr.mxu0 0.0
        %1093 = vmatpush1.msra.mxu0 %v1057
        %1094 = vmatprep.subr.mxu0 0.0
        %1095 = vmatpush1.msra.mxu0 %v1056
        %1096 = vmatprep.subr.mxu0 0.0
        %1097 = vmatpush1.msra.mxu0 %v1055
        %1098 = vmatprep.subr.mxu0 0.0
        %1099 = vmatpush1.msra.mxu0 %v1054
        %1100 = vmatprep.subr.mxu0 0.0
        %1101 = vmatpush1.msra.mxu0 %v1053
        %1102 = vmatprep.subr.mxu0 0.0
        %1103 = vmatpush1.msra.mxu0 %v1052
        %1104 = vmatprep.subr.mxu0 0.0
        %1105 = vmatpush1.msra.mxu0 %v1051
        %1106 = vmatprep.subr.mxu0 0.0
        %1107 = vmatpush1.msra.mxu0 %v1050
        %1108 = vmatprep.subr.mxu0 0.0
        %1109 = vmatpush1.msra.mxu0 %v1049
        %1110 = vmatprep.subr.mxu0 0.0
        %1111 = vmatpush1.msra.mxu0 %v1048
        %1112 = vmatprep.subr.mxu0 0.0
        %1113 = vmatpush2.msra.mxu0 %v1079
        %1114 = vmatprep.subr.mxu0 0.0
        %1115 = vmatpush2.msra.mxu0 %v1078
        %1116 = vmatprep.subr.mxu0 0.0
        %1117 = vmatpush2.msra.mxu0 %v1077
        %1118 = vmatprep.subr.mxu0 0.0
        %1119 = vmatpush2.msra.mxu0 %v1076
        %1120 = vmatprep.subr.mxu0 0.0
        %1121 = vmatpush2.msra.mxu0 %v1075
        %1122 = vmatprep.subr.mxu0 0.0
        %1123 = vmatpush2.msra.mxu0 %v1074
        %1124 = vmatprep.subr.mxu0 0.0
        %1125 = vmatpush2.msra.mxu0 %v1073
        %1126 = vmatprep.subr.mxu0 0.0
        %1127 = vmatpush2.msra.mxu0 %v1072
        %1128 = vmatprep.subr.mxu0 0.0
        %1129 = vmatpush2.msra.mxu0 %v1071
        %1130 = vmatprep.subr.mxu0 0.0
        %1131 = vmatpush2.msra.mxu0 %v1070
        %1132 = vmatprep.subr.mxu0 0.0
        %1133 = vmatpush2.msra.mxu0 %v1069
        %1134 = vmatprep.subr.mxu0 0.0
        %1135 = vmatpush2.msra.mxu0 %v1068
        %1136 = vmatprep.subr.mxu0 0.0
        %1137 = vmatpush2.msra.mxu0 %v1067
        %1138 = vmatprep.subr.mxu0 0.0
        %1139 = vmatpush2.msra.mxu0 %v1066
        %1140 = vmatprep.subr.mxu0 0.0
        %1141 = vmatpush2.msra.mxu0 %v1065
        %1142 = vmatprep.subr.mxu0 0.0
        %1143 = vmatpush2.msra.mxu0 %v1064
        %1144 = vmatprep.mubr.f32.mxu0 %v1017
        %1145 = vmatmul.mubr.f32.gmra.mxu0 %v1016
        %v1146 = vpop.f32.mrf.mxu0
        %v1147 = vadd.f32 0.0, %v1146
        %v1148 = vpop.f32.mrf.mxu0
        %1149 = vmatprep.mubr.f32.mxu0 %v1019
        %1150 = vmatmul.mubr.f32.gmra.mxu0 %v1018
        %v1151 = vpop.f32.mrf.mxu0
        %v1152 = vadd.f32 0.0, %v1151
        %v1153 = vpop.f32.mrf.mxu0
        %1154 = vmatprep.mubr.f32.mxu0 %v1021
        %1155 = vmatmul.mubr.f32.gmra.mxu0 %v1020
        %v1156 = vpop.f32.mrf.mxu0
        %v1157 = vadd.f32 0.0, %v1156
        %v1158 = vpop.f32.mrf.mxu0
        %1159 = vmatprep.mubr.f32.mxu0 %v1023
        %1160 = vmatmul.mubr.f32.gmra.mxu0 %v1022
        %v1161 = vpop.f32.mrf.mxu0
        %v1162 = vadd.f32 0.0, %v1161
        %v1163 = vpop.f32.mrf.mxu0
        %1164 = vmatprep.mubr.f32.mxu0 %v1025
        %1165 = vmatmul.mubr.f32.gmra.mxu0 %v1024
        %v1166 = vpop.f32.mrf.mxu0
        %v1167 = vadd.f32 0.0, %v1166
        %v1168 = vpop.f32.mrf.mxu0
        %1169 = vmatprep.mubr.f32.mxu0 %v1027
        %1170 = vmatmul.mubr.f32.gmra.mxu0 %v1026
        %v1171 = vpop.f32.mrf.mxu0
        %v1172 = vadd.f32 0.0, %v1171
        %v1173 = vpop.f32.mrf.mxu0
        %1174 = vmatprep.mubr.f32.mxu0 %v1029
        %1175 = vmatmul.mubr.f32.gmra.mxu0 %v1028
        %v1176 = vpop.f32.mrf.mxu0
        %v1177 = vadd.f32 0.0, %v1176
        %v1178 = vpop.f32.mrf.mxu0
        %1179 = vmatprep.mubr.f32.mxu0 %v1031
        %1180 = vmatmul.mubr.f32.gmra.mxu0 %v1030
        %v1181 = vpop.f32.mrf.mxu0
        %v1182 = vadd.f32 0.0, %v1181
        %v1183 = vpop.f32.mrf.mxu0
        %1184 = vmatprep.mubr.f32.mxu0 %v1033
        %1185 = vmatmul.mubr.f32.gmra.mxu0 %v1032
        %v1186 = vpop.f32.mrf.mxu0
        %v1187 = vadd.f32 0.0, %v1186
        %v1188 = vpop.f32.mrf.mxu0
        %1189 = vmatprep.mubr.f32.mxu0 %v1035
        %1190 = vmatmul.mubr.f32.gmra.mxu0 %v1034
        %v1191 = vpop.f32.mrf.mxu0
        %v1192 = vadd.f32 0.0, %v1191
        %v1193 = vpop.f32.mrf.mxu0
        %1194 = vmatprep.mubr.f32.mxu0 %v1037
        %1195 = vmatmul.mubr.f32.gmra.mxu0 %v1036
        %v1196 = vpop.f32.mrf.mxu0
        %v1197 = vadd.f32 0.0, %v1196
        %v1198 = vpop.f32.mrf.mxu0
        %1199 = vmatprep.mubr.f32.mxu0 %v1039
        %1200 = vmatmul.mubr.f32.gmra.mxu0 %v1038
        %v1201 = vpop.f32.mrf.mxu0
        %v1202 = vadd.f32 0.0, %v1201
        %v1203 = vpop.f32.mrf.mxu0
        %1204 = vmatprep.mubr.f32.mxu0 %v1041
        %1205 = vmatmul.mubr.f32.gmra.mxu0 %v1040
        %v1206 = vpop.f32.mrf.mxu0
        %v1207 = vadd.f32 0.0, %v1206
        %v1208 = vpop.f32.mrf.mxu0
        %1209 = vmatprep.mubr.f32.mxu0 %v1043
        %1210 = vmatmul.mubr.f32.gmra.mxu0 %v1042
        %v1211 = vpop.f32.mrf.mxu0
        %v1212 = vadd.f32 0.0, %v1211
        %v1213 = vpop.f32.mrf.mxu0
        %1214 = vmatprep.mubr.f32.mxu0 %v1045
        %1215 = vmatmul.mubr.f32.gmra.mxu0 %v1044
        %v1216 = vpop.f32.mrf.mxu0
        %v1217 = vadd.f32 0.0, %v1216
        %v1218 = vpop.f32.mrf.mxu0
        %1219 = vmatprep.mubr.f32.mxu0 %v1047
        %1220 = vmatmul.mubr.f32.gmra.mxu0 %v1046
        %v1221 = vpop.f32.mrf.mxu0
        %v1222 = vadd.f32 0.0, %v1221
        %v1223 = vpop.f32.mrf.mxu0
        %1224 = vdwg.mxu0
        %v1225 = vld [vmem:[%s367] sm:$0xff]
        %v1226 = vld [vmem:[%s367 + $0x8] sm:$0xff]
        %v1227 = vld [vmem:[%s367 + $0x10] sm:$0xff]
        %v1228 = vld [vmem:[%s367 + $0x18] sm:$0xff]
        %v1229 = vld [vmem:[%s367 + $0x20] sm:$0xff]
        %v1230 = vld [vmem:[%s367 + $0x28] sm:$0xff]
        %v1231 = vld [vmem:[%s367 + $0x30] sm:$0xff]
        %v1232 = vld [vmem:[%s367 + $0x38] sm:$0xff]
        %v1233 = vld [vmem:[%s367 + $0x40] sm:$0xff]
        %v1234 = vld [vmem:[%s367 + $0x48] sm:$0xff]
        %v1235 = vld [vmem:[%s367 + $0x50] sm:$0xff]
        %v1236 = vld [vmem:[%s367 + $0x58] sm:$0xff]
        %v1237 = vld [vmem:[%s367 + $0x60] sm:$0xff]
        %v1238 = vld [vmem:[%s367 + $0x68] sm:$0xff]
        %v1239 = vld [vmem:[%s367 + $0x70] sm:$0xff]
        %v1240 = vld [vmem:[%s367 + $0x78] sm:$0xff]
        %v1241 = vlaneseq
        %v1242 = vand.u32 %v1241, 127
        %v1243 = vstv %s28
        %vm1244 = vcmp.eq.s32.totalorder %v1242, %v1243
        %v1245 = vsel %vm1244, %v1225, 0.0
        %v1246 = vsel %vm1244, %v1226, 0.0
        %v1247 = vsel %vm1244, %v1227, 0.0
        %v1248 = vsel %vm1244, %v1228, 0.0
        %v1249 = vsel %vm1244, %v1229, 0.0
        %v1250 = vsel %vm1244, %v1230, 0.0
        %v1251 = vsel %vm1244, %v1231, 0.0
        %v1252 = vsel %vm1244, %v1232, 0.0
        %v1253 = vsel %vm1244, %v1233, 0.0
        %v1254 = vsel %vm1244, %v1234, 0.0
        %v1255 = vsel %vm1244, %v1235, 0.0
        %v1256 = vsel %vm1244, %v1236, 0.0
        %v1257 = vsel %vm1244, %v1237, 0.0
        %v1258 = vsel %vm1244, %v1238, 0.0
        %v1259 = vsel %vm1244, %v1239, 0.0
        %v1260 = vsel %vm1244, %v1240, 0.0
        %vm1261 = vcmask 39936
        %v1262 = vsel %vm1261, %v1245, 0.0
        %1263 = vadd.xlane.f32.xlu0 %v1262
        %v1264 = vpop.xlane.xlu0 %1263
        %v1265 = vsel %vm1261, %v1246, 0.0
        %1266 = vadd.xlane.f32.xlu0 %v1265
        %v1267 = vpop.xlane.xlu0 %1266
        %v1268 = vsel %vm1261, %v1247, 0.0
        %1269 = vadd.xlane.f32.xlu0 %v1268
        %v1270 = vpop.xlane.xlu0 %1269
        %v1271 = vsel %vm1261, %v1248, 0.0
        %1272 = vadd.xlane.f32.xlu0 %v1271
        %v1273 = vpop.xlane.xlu0 %1272
        %v1274 = vsel %vm1261, %v1249, 0.0
        %1275 = vadd.xlane.f32.xlu0 %v1274
        %v1276 = vpop.xlane.xlu0 %1275
        %v1277 = vsel %vm1261, %v1250, 0.0
        %1278 = vadd.xlane.f32.xlu0 %v1277
        %v1279 = vpop.xlane.xlu0 %1278
        %v1280 = vsel %vm1261, %v1251, 0.0
        %1281 = vadd.xlane.f32.xlu0 %v1280
        %v1282 = vpop.xlane.xlu0 %1281
        %v1283 = vsel %vm1261, %v1252, 0.0
        %1284 = vadd.xlane.f32.xlu0 %v1283
        %v1285 = vpop.xlane.xlu0 %1284
        %v1286 = vsel %vm1261, %v1253, 0.0
        %1287 = vadd.xlane.f32.xlu0 %v1286
        %v1288 = vpop.xlane.xlu0 %1287
        %v1289 = vsel %vm1261, %v1254, 0.0
        %1290 = vadd.xlane.f32.xlu0 %v1289
        %v1291 = vpop.xlane.xlu0 %1290
        %v1292 = vsel %vm1261, %v1255, 0.0
        %1293 = vadd.xlane.f32.xlu0 %v1292
        %v1294 = vpop.xlane.xlu0 %1293
        %v1295 = vsel %vm1261, %v1256, 0.0
        %1296 = vadd.xlane.f32.xlu0 %v1295
        %v1297 = vpop.xlane.xlu0 %1296
        %v1298 = vsel %vm1261, %v1257, 0.0
        %1299 = vadd.xlane.f32.xlu0 %v1298
        %v1300 = vpop.xlane.xlu0 %1299
        %v1301 = vsel %vm1261, %v1258, 0.0
        %1302 = vadd.xlane.f32.xlu0 %v1301
        %v1303 = vpop.xlane.xlu0 %1302
        %v1304 = vsel %vm1261, %v1259, 0.0
        %1305 = vadd.xlane.f32.xlu0 %v1304
        %v1306 = vpop.xlane.xlu0 %1305
        %v1307 = vsel %vm1261, %v1260, 0.0
        %1308 = vadd.xlane.f32.xlu0 %v1307
        %v1309 = vpop.xlane.xlu0 %1308
        %v1310 = vld [vmem:[#allocation2] sm:$0xff]
        %v1311 = vld [vmem:[#allocation2 + $0x8] sm:$0xff]
        %v1312 = vld [vmem:[#allocation2 + $0x10] sm:$0xff]
        %v1313 = vld [vmem:[#allocation2 + $0x18] sm:$0xff]
        %v1314 = vld [vmem:[#allocation2 + $0x20] sm:$0xff]
        %v1315 = vld [vmem:[#allocation2 + $0x28] sm:$0xff]
        %v1316 = vld [vmem:[#allocation2 + $0x30] sm:$0xff]
        %v1317 = vld [vmem:[#allocation2 + $0x38] sm:$0xff]
        %v1318 = vld [vmem:[#allocation2 + $0x40] sm:$0xff]
        %v1319 = vld [vmem:[#allocation2 + $0x48] sm:$0xff]
        %v1320 = vld [vmem:[#allocation2 + $0x50] sm:$0xff]
        %v1321 = vld [vmem:[#allocation2 + $0x58] sm:$0xff]
        %v1322 = vld [vmem:[#allocation2 + $0x60] sm:$0xff]
        %v1323 = vld [vmem:[#allocation2 + $0x68] sm:$0xff]
        %v1324 = vld [vmem:[#allocation2 + $0x70] sm:$0xff]
        %v1325 = vld [vmem:[#allocation2 + $0x78] sm:$0xff]
        %v1326 = vmul.f32 %v1264, %v1147
        %v1327 = vmul.f32 %v1267, %v1152
        %v1328 = vmul.f32 %v1270, %v1157
        %v1329 = vmul.f32 %v1273, %v1162
        %v1330 = vmul.f32 %v1276, %v1167
        %v1331 = vmul.f32 %v1279, %v1172
        %v1332 = vmul.f32 %v1282, %v1177
        %v1333 = vmul.f32 %v1285, %v1182
        %v1334 = vmul.f32 %v1288, %v1187
        %v1335 = vmul.f32 %v1291, %v1192
        %v1336 = vmul.f32 %v1294, %v1197
        %v1337 = vmul.f32 %v1297, %v1202
        %v1338 = vmul.f32 %v1300, %v1207
        %v1339 = vmul.f32 %v1303, %v1212
        %v1340 = vmul.f32 %v1306, %v1217
        %v1341 = vmul.f32 %v1309, %v1222
        %v1342 = vadd.f32 %v1310, %v1326
        %v1343 = vadd.f32 %v1311, %v1327
        %v1344 = vadd.f32 %v1312, %v1328
        %v1345 = vadd.f32 %v1313, %v1329
        %v1346 = vadd.f32 %v1314, %v1330
        %v1347 = vadd.f32 %v1315, %v1331
        %v1348 = vadd.f32 %v1316, %v1332
        %v1349 = vadd.f32 %v1317, %v1333
        %v1350 = vadd.f32 %v1318, %v1334
        %v1351 = vadd.f32 %v1319, %v1335
        %v1352 = vadd.f32 %v1320, %v1336
        %v1353 = vadd.f32 %v1321, %v1337
        %v1354 = vadd.f32 %v1322, %v1338
        %v1355 = vadd.f32 %v1323, %v1339
        %v1356 = vadd.f32 %v1324, %v1340
        %v1357 = vadd.f32 %v1325, %v1341
        %1358 = vst [vmem:[#allocation2] sm:$0xff] %v1342
        %1359 = vst [vmem:[#allocation2 + $0x8] sm:$0xff] %v1343
        %1360 = vst [vmem:[#allocation2 + $0x10] sm:$0xff] %v1344
        %1361 = vst [vmem:[#allocation2 + $0x18] sm:$0xff] %v1345
        %1362 = vst [vmem:[#allocation2 + $0x20] sm:$0xff] %v1346
        %1363 = vst [vmem:[#allocation2 + $0x28] sm:$0xff] %v1347
        %1364 = vst [vmem:[#allocation2 + $0x30] sm:$0xff] %v1348
        %1365 = vst [vmem:[#allocation2 + $0x38] sm:$0xff] %v1349
        %1366 = vst [vmem:[#allocation2 + $0x40] sm:$0xff] %v1350
        %1367 = vst [vmem:[#allocation2 + $0x48] sm:$0xff] %v1351
        %1368 = vst [vmem:[#allocation2 + $0x50] sm:$0xff] %v1352
        %1369 = vst [vmem:[#allocation2 + $0x58] sm:$0xff] %v1353
        %1370 = vst [vmem:[#allocation2 + $0x60] sm:$0xff] %v1354
        %1371 = vst [vmem:[#allocation2 + $0x68] sm:$0xff] %v1355
        %1372 = vst [vmem:[#allocation2 + $0x70] sm:$0xff] %v1356
        %1373 = vst [vmem:[#allocation2 + $0x78] sm:$0xff] %v1357
        %p1374 = scmp.eq.s32.totalorder %s28, 4
        // Predicated region
        $region57: #{tpu_custom_call.1} parent=39 // pred_check
          %p1375 = pneg %p1374
        $region58: #{tpu_custom_call.1} parent=39 // pred_check_branch
          %1377 = sbr.rel (%p1375) target = $region60
        $region59: #{tpu_custom_call.1} parent=39 // pred_region
          %v1378 = vld [vmem:[#allocation2] sm:$0xff]
          %v1379 = vld [vmem:[#allocation2 + $0x8] sm:$0xff]
          %v1380 = vld [vmem:[#allocation2 + $0x10] sm:$0xff]
          %v1381 = vld [vmem:[#allocation2 + $0x18] sm:$0xff]
          %v1382 = vld [vmem:[#allocation2 + $0x20] sm:$0xff]
          %v1383 = vld [vmem:[#allocation2 + $0x28] sm:$0xff]
          %v1384 = vld [vmem:[#allocation2 + $0x30] sm:$0xff]
          %v1385 = vld [vmem:[#allocation2 + $0x38] sm:$0xff]
          %v1386 = vld [vmem:[#allocation2 + $0x40] sm:$0xff]
          %v1387 = vld [vmem:[#allocation2 + $0x48] sm:$0xff]
          %v1388 = vld [vmem:[#allocation2 + $0x50] sm:$0xff]
          %v1389 = vld [vmem:[#allocation2 + $0x58] sm:$0xff]
          %v1390 = vld [vmem:[#allocation2 + $0x60] sm:$0xff]
          %v1391 = vld [vmem:[#allocation2 + $0x68] sm:$0xff]
          %v1392 = vld [vmem:[#allocation2 + $0x70] sm:$0xff]
          %v1393 = vld [vmem:[#allocation2 + $0x78] sm:$0xff]
          %1394 = vst [vmem:[#allocation9] sm:$0xff] %v1378
          %1395 = vst [vmem:[#allocation9 + $0x8] sm:$0xff] %v1379
          %1396 = vst [vmem:[#allocation9 + $0x10] sm:$0xff] %v1380
          %1397 = vst [vmem:[#allocation9 + $0x18] sm:$0xff] %v1381
          %1398 = vst [vmem:[#allocation9 + $0x20] sm:$0xff] %v1382
          %1399 = vst [vmem:[#allocation9 + $0x28] sm:$0xff] %v1383
          %1400 = vst [vmem:[#allocation9 + $0x30] sm:$0xff] %v1384
          %1401 = vst [vmem:[#allocation9 + $0x38] sm:$0xff] %v1385
          %1402 = vst [vmem:[#allocation9 + $0x40] sm:$0xff] %v1386
          %1403 = vst [vmem:[#allocation9 + $0x48] sm:$0xff] %v1387
          %1404 = vst [vmem:[#allocation9 + $0x50] sm:$0xff] %v1388
          %1405 = vst [vmem:[#allocation9 + $0x58] sm:$0xff] %v1389
          %1406 = vst [vmem:[#allocation9 + $0x60] sm:$0xff] %v1390
          %1407 = vst [vmem:[#allocation9 + $0x68] sm:$0xff] %v1391
          %1408 = vst [vmem:[#allocation9 + $0x70] sm:$0xff] %v1392
          %1409 = vst [vmem:[#allocation9 + $0x78] sm:$0xff] %v1393
        $region60: #{tpu_custom_call.1} parent=39 // pred_fallthru
          _
        // Predicated region
        $region61: #{tpu_custom_call.1} parent=39 // pred_check
          %p1410 = pneg %p183
        $region62: #{tpu_custom_call.1} parent=39 // pred_check_branch
          %1412 = sbr.rel (%p1410) target = $region64
        $region63: #{tpu_custom_call.1} parent=39 // pred_region
          %s1413 = smul.u32 16, %s27
          %s1415 = ssub.s32 2048, 2048
          %1416 = vsyncadd [#allocation5], %s1415
          %s1417 = smul.addr %s1413, 128
          %s1418 = scalar_lea.hbm %s5, %s1417
          %s1419 = sshll.u32 [#allocation9], 4
          %s1420 = int_to_ptr.vmem [resolvable:$true] %s1419
          %1425 = dma.vmem_to_hbm [thread:$0]  %s1420, 2048, %s1418, [#allocation5], 128, 128, 8
        $region64: #{tpu_custom_call.1} parent=39 // pred_fallthru
          _
        // Predicated region
        $region65: #{tpu_custom_call.1} parent=39 // pred_check
          %p1426 = pneg %p183
        $region66: #{tpu_custom_call.1} parent=39 // pred_check_branch
          %1428 = sbr.rel (%p1426) target = $region68
        $region67: #{tpu_custom_call.1} parent=39 // pred_region
          %1429 = dma.done [#allocation5], 2048
        $region68: #{tpu_custom_call.1} parent=39 // pred_fallthru
          _
      $region40: #{tpu_custom_call.1} parent=5 // pred_fallthru
        _
      %p1430 = scmp.le.s32.totalorder 2, %s18
      // Predicated region
      $region69: #{tpu_custom_call.1} parent=5 // pred_check
        %p1431 = pneg %p1430
      $region70: #{tpu_custom_call.1} parent=5 // pred_check_branch
        %1433 = sbr.rel (%p1431) target = $region72
      $region71: #{tpu_custom_call.1} parent=5 // pred_region
        %s1434 = ssub.s32 %s18, 2
      $region72: #{tpu_custom_call.1} parent=5 // pred_fallthru
        _
    $region6: #{tpu_custom_call.1} parent=1 // loop_footer
      %s22 = sadd.s32 1, %s18
    $region7: #{tpu_custom_call.1} parent=1 // loop_footer_branch
      %17 = sbr.rel target = $region3
    $region8: #{tpu_custom_call.1} parent=1 // loop_exit
      _
    %1435 = vsyncpa [#allocation4], 1
    %s1436 = scalar_lea.sflag [#allocation4], 1
    %1437 = vsyncpa %s1436, 1
    %1438 = vsyncpa [#allocation7], 1
    %s1439 = scalar_lea.sflag [#allocation7], 1
    %1440 = vsyncpa %s1439, 1
    %1441 = vsyncpa [#allocation5], 1
    %s1442 = scalar_lea.sflag [#allocation5], 1
    %1443 = vsyncpa %s1442, 1

</llo_original>
